<compile_context>
chip_gen: v6e
topology: v6e:2x2x1
jax: 0.10.0
libtpu: 0.0.40
codegen_flags: <defaults>
</compile_context>

<pallas_src>
import functools
import inspect

import jax
import jax.numpy as jnp
import numpy as np
from jax import lax
from jax.experimental import pallas as pl
from jax.experimental.pallas import tpu as pltpu


def _weight_pipeline_mode():
    """pl.Buffered(1) for never-changing weight blocks, if supported."""
    try:
        if hasattr(pl, "Buffered") and (
                "pipeline_mode" in inspect.signature(pl.BlockSpec).parameters):
            return pl.Buffered(buffer_count=1)
    except (TypeError, ValueError):
        pass
    return None


def bottleneck_kernel(x_ref, w1_ref, t1_ref, w2_ref, t2_ref, w3_ref, t3_ref,
                      o_ref, *, kernel_size):
    """One batch element per grid step, NCL layout (channels=sublanes, L=lanes).

    x_ref  : (Cin, L)   f32            input slice (kept f32 for the residual)
    w1_ref : (P, Cin)   matmul_dtype   conv1 (1x1) weight, bn1 folded
    t1_ref : (P, 1)     f32            folded conv1 bias + bn1 shift
    w2_ref : (K, P, P)  matmul_dtype   conv2 taps, bn2 folded
    t2_ref : (P, 1)     f32
    w3_ref : (Cout, P)  matmul_dtype   conv3 (1x1) weight, bn3 folded
    t3_ref : (Cout, 1)  f32
    o_ref  : (Cout, L)  f32
    """
    K = kernel_size
    pad = K // 2
    L = x_ref.shape[1]

    x = x_ref[...]                              # f32, reused by the residual
    xm = x.astype(w1_ref.dtype)                 # bf16 operand for the MXU

    # ---- conv1 (1x1) + bn1 + relu : one MXU matmul, f32 accumulate ----
    h1 = jnp.dot(w1_ref[...], xm, preferred_element_type=jnp.float32)
    h1 = jnp.maximum(h1 + t1_ref[...], 0.0)
    h1 = h1.astype(w2_ref.dtype)                # cast back before next MXU op

    # ---- conv2 (K taps, pad=K//2) + bn2 + relu ----
    # K accumulating matmuls over lane-shifted h1; no K-wide im2col copy.
    h1p = jnp.pad(h1, ((0, 0), (pad, pad)))
    acc = jnp.dot(w2_ref[0], h1p[:, 0:L], preferred_element_type=jnp.float32)
    for k in range(1, K):
        acc += jnp.dot(w2_ref[k], h1p[:, k:k + L],
                       preferred_element_type=jnp.float32)
    h2 = jnp.maximum(acc + t2_ref[...], 0.0)
    h2 = h2.astype(w3_ref.dtype)                # cast back before next MXU op

    # ---- conv3 (1x1) + bn3 ----
    h3 = jnp.dot(w3_ref[...], h2, preferred_element_type=jnp.float32)
    h3 = h3 + t3_ref[...]

    # ---- residual (identity, downsample=None) + relu (f32 epilogue) ----
    o_ref[...] = jnp.maximum(h3 + x, 0.0).astype(o_ref.dtype)


def bottleneck_forward(x_ncl, params, kernel_size=3,
                       matmul_dtype=jnp.bfloat16):
    """x_ncl: (N, Cin, L) float32, PyTorch NCL layout. Returns (N, Cout, L)."""
    eps = 1e-5
    K = kernel_size
    N, Cin, L = x_ncl.shape
    P = params["conv1_w"].shape[0]        # planes
    Cout = params["conv3_w"].shape[0]     # planes * expansion
    assert Cin == Cout, "downsample=None requires inplanes == planes*expansion"

    def fold(g, bt, m, v, b):
        """Fold conv bias + eval-mode BN into a per-channel scale / shift."""
        scale = g / jnp.sqrt(v + eps)                       # (cout,)
        shift = ((b - m) * scale + bt)[:, None]             # (cout, 1)
        return scale, shift.astype(jnp.float32)

    s1, t1 = fold(params["bn1_g"], params["bn1_b"], params["bn1_m"],
                  params["bn1_v"], params["conv1_b"])
    s2, t2 = fold(params["bn2_g"], params["bn2_b"], params["bn2_m"],
                  params["bn2_v"], params["conv2_b"])
    s3, t3 = fold(params["bn3_g"], params["bn3_b"], params["bn3_m"],
                  params["bn3_v"], params["conv3_b"])

    # Weight prep (tiny, one-time): fold BN scale and cast to matmul dtype.
    w1 = (params["conv1_w"][:, :, 0] * s1[:, None]).astype(matmul_dtype)  # (P, Cin)
    w2 = (jnp.transpose(params["conv2_w"], (2, 0, 1))
          * s2[None, :, None]).astype(matmul_dtype)                       # (K, P, P)
    w3 = (params["conv3_w"][:, :, 0] * s3[:, None]).astype(matmul_dtype)  # (Cout, P)

    x = x_ncl.astype(jnp.float32)   # read once in f32; residual stays exact

    wmode = _weight_pipeline_mode()

    def build_and_run(weight_mode):
        def wspec(shape):
            ndim = len(shape)

            def idx(n):
                return (0,) * ndim

            if weight_mode is not None:
                return pl.BlockSpec(shape, idx, pipeline_mode=weight_mode)
            return pl.BlockSpec(shape, idx)

        return pl.pallas_call(
            functools.partial(bottleneck_kernel, kernel_size=K),
            out_shape=jax.ShapeDtypeStruct((N, Cout, L), jnp.float32),
            grid_spec=pltpu.PrefetchScalarGridSpec(
                num_scalar_prefetch=0,
                grid=(N,),                              # deep, parallel grid
                in_specs=[
                    pl.BlockSpec((None, Cin, L), lambda n: (n, 0, 0)),   # x
                    wspec((P, Cin)), wspec((P, 1)),
                    wspec((K, P, P)), wspec((P, 1)),
                    wspec((Cout, P)), wspec((Cout, 1)),
                ],
                out_specs=pl.BlockSpec((None, Cout, L), lambda n: (n, 0, 0)),
            ),
            compiler_params=pltpu.CompilerParams(
                dimension_semantics=("parallel",),
                # Explicit cap; per-step footprint here is a few (C*L) tiles,
                # well under 64 MiB even on v7x. Re-derive if L-tiling is added.
                vmem_limit_bytes=64 * 1024 * 1024,
            ),
        )(x, w1, t1, w2, t2, w3, t3)

    if wmode is not None:
        try:
            return build_and_run(wmode)
        except Exception:  # pragma: no cover - fall back if Buffered(1) rejected
            pass
    return build_and_run(None)


def reference_forward(x_ncl, params, kernel_size=3):
    """Pure-JAX reference (lax.conv, eval-mode BN) for correctness check."""
    eps = 1e-5
    pad = kernel_size // 2

    def conv(h, w, b, p):
        y = lax.conv_general_dilated(
            h, w, window_strides=(1,), padding=[(p, p)],
            dimension_numbers=("NCH", "OIH", "NCH"))
        return y + b[None, :, None]

    def bn(h, g, b, m, v):
        return (h - m[None, :, None]) / jnp.sqrt(v[None, :, None] + eps) \
            * g[None, :, None] + b[None, :, None]

    out = conv(x_ncl, params["conv1_w"], params["conv1_b"], 0)
    out = bn(out, params["bn1_g"], params["bn1_b"],
             params["bn1_m"], params["bn1_v"])
    out = jnp.maximum(out, 0.0)
    out = conv(out, params["conv2_w"], params["conv2_b"], pad)
    out = bn(out, params["bn2_g"], params["bn2_b"],
             params["bn2_m"], params["bn2_v"])
    out = jnp.maximum(out, 0.0)
    out = conv(out, params["conv3_w"], params["conv3_b"], 0)
    out = bn(out, params["bn3_g"], params["bn3_b"],
             params["bn3_m"], params["bn3_v"])
    out = out + x_ncl
    return jnp.maximum(out, 0.0)


if __name__ == "__main__":
    # Small shapes consistent with the module: planes=8, expansion=4,
    # inplanes = planes*4 = 32 so the identity residual works (downsample=None).
    planes, K = 8, 3
    Cin = planes * 4
    N, L = 4, 16

    key = jax.random.PRNGKey(0)
    ks = jax.random.split(key, 19)

    def rnd(k, shape, scale=0.1):
        return scale * jax.random.normal(k, shape, jnp.float32)

    params = {
        "conv1_w": rnd(ks[0], (planes, Cin, 1)),
        "conv1_b": rnd(ks[1], (planes,)),
        "bn1_g": 1.0 + rnd(ks[2], (planes,)),
        "bn1_b": rnd(ks[3], (planes,)),
        "bn1_m": rnd(ks[4], (planes,)),
        "bn1_v": 1.0 + 0.1 * jnp.abs(jax.random.normal(ks[5], (planes,), jnp.float32)),
        "conv2_w": rnd(ks[6], (planes, planes, K)),
        "conv2_b": rnd(ks[7], (planes,)),
        "bn2_g": 1.0 + rnd(ks[8], (planes,)),
        "bn2_b": rnd(ks[9], (planes,)),
        "bn2_m": rnd(ks[10], (planes,)),
        "bn2_v": 1.0 + 0.1 * jnp.abs(jax.random.normal(ks[11], (planes,), jnp.float32)),
        "conv3_w": rnd(ks[12], (Cin, planes, 1)),
        "conv3_b": rnd(ks[13], (Cin,)),
        "bn3_g": 1.0 + rnd(ks[14], (Cin,)),
        "bn3_b": rnd(ks[15], (Cin,)),
        "bn3_m": rnd(ks[16], (Cin,)),
        "bn3_v": 1.0 + 0.1 * jnp.abs(jax.random.normal(ks[17], (Cin,), jnp.float32)),
    }

    # PyTorch-layout input (N, C, L).
    x = jax.random.normal(ks[18], (N, Cin, L), jnp.float32)

    ref = jax.block_until_ready(reference_forward(x, params, kernel_size=K))

    # Strict numerical check of the kernel algebra with f32 MXU operands.
    out_f32 = jax.block_until_ready(
        bottleneck_forward(x, params, kernel_size=K, matmul_dtype=jnp.float32))
    np.testing.assert_allclose(np.asarray(out_f32), np.asarray(ref),
                               rtol=1e-4, atol=1e-5)

    # Default fast path: bf16 MXU operands, f32 accumulation, f32 residual.
    out_bf16 = jax.block_until_ready(
        bottleneck_forward(x, params, kernel_size=K))
    np.testing.assert_allclose(np.asarray(out_bf16), np.asarray(ref),
                               rtol=3e-2, atol=3e-2)

    print("KERNEL_OK")
</pallas_src>

<mosaic_0001>
module attributes {stable_mosaic.version = 11 : i64} {
  func.func @bottleneck_kernel(%arg0: i32, %arg1: memref<1x32x16xf32, #tpu.memory_space<vmem>>, %arg2: memref<8x32xf32, #tpu.memory_space<vmem>>, %arg3: memref<8x1xf32, #tpu.memory_space<vmem>>, %arg4: memref<3x8x8xf32, #tpu.memory_space<vmem>>, %arg5: memref<8x1xf32, #tpu.memory_space<vmem>>, %arg6: memref<32x8xf32, #tpu.memory_space<vmem>>, %arg7: memref<32x1xf32, #tpu.memory_space<vmem>>, %arg8: memref<1x32x16xf32, #tpu.memory_space<vmem>>) attributes {dimension_semantics = [#tpu.dimension_semantics<parallel>], iteration_bounds = array<i64: 4>, scalar_prefetch = 0 : i64, scratch_operands = 0 : i64, tpu.core_type = #tpu.core_type<tc>, window_params = [{transform_indices = @transform_0, window_bounds = array<i64: 1, 32, 16>}, {pipeline_mode = #tpu.pipeline_mode<synchronous>, transform_indices = @transform_1, window_bounds = array<i64: 8, 32>}, {pipeline_mode = #tpu.pipeline_mode<synchronous>, transform_indices = @transform_2, window_bounds = array<i64: 8, 1>}, {pipeline_mode = #tpu.pipeline_mode<synchronous>, transform_indices = @transform_3, window_bounds = array<i64: 3, 8, 8>}, {pipeline_mode = #tpu.pipeline_mode<synchronous>, transform_indices = @transform_4, window_bounds = array<i64: 8, 1>}, {pipeline_mode = #tpu.pipeline_mode<synchronous>, transform_indices = @transform_5, window_bounds = array<i64: 32, 8>}, {pipeline_mode = #tpu.pipeline_mode<synchronous>, transform_indices = @transform_6, window_bounds = array<i64: 32, 1>}, {transform_indices = @transform_7, window_bounds = array<i64: 1, 32, 16>}]} {
    %c0 = arith.constant 0 : index
    %c0_0 = arith.constant 0 : index
    %c0_1 = arith.constant 0 : index
    %0 = vector.load %arg1[%c0, %c0_0, %c0_1] : memref<1x32x16xf32, #tpu.memory_space<vmem>>, vector<1x32x16xf32>
    %1 = vector.shape_cast %0 : vector<1x32x16xf32> to vector<32x16xf32>
    %c0_2 = arith.constant 0 : index
    %c0_3 = arith.constant 0 : index
    %2 = vector.load %arg2[%c0_2, %c0_3] : memref<8x32xf32, #tpu.memory_space<vmem>>, vector<8x32xf32>
    %cst = arith.constant dense<0.000000e+00> : vector<8x16xf32>
    %3 = tpu.matmul %2, %1, %cst {dimension_numbers = #tpu.dot_dimension_numbers<[1], [0], [0], [1], [0, 0, 1, 1], [], []>} : vector<8x32xf32>, vector<32x16xf32>, vector<8x16xf32> -> vector<8x16xf32>
    %c0_4 = arith.constant 0 : index
    %c0_5 = arith.constant 0 : index
    %4 = vector.load %arg3[%c0_4, %c0_5] : memref<8x1xf32, #tpu.memory_space<vmem>>, vector<8x1xf32>
    %5 = vector.broadcast %4 : vector<8x1xf32> to vector<8x16xf32>
    %6 = arith.addf %3, %5 : vector<8x16xf32>
    %cst_6 = arith.constant 0.000000e+00 : f32
    %7 = vector.broadcast %cst_6 : f32 to vector<8x16xf32>
    %8 = arith.maximumf %6, %7 : vector<8x16xf32>
    %c0_i32 = arith.constant 0 : i32
    %9 = arith.sitofp %c0_i32 : i32 to f32
    %10 = vector.broadcast %9 : f32 to vector<8x1xf32>
    %11 = tpu.concatenate %10, %8 in 1 : vector<8x1xf32>, vector<8x16xf32> -> vector<8x17xf32>
    %12 = vector.broadcast %9 : f32 to vector<8x1xf32>
    %13 = tpu.concatenate %11, %12 in 1 : vector<8x17xf32>, vector<8x1xf32> -> vector<8x18xf32>
    %c0_7 = arith.constant 0 : index
    %c0_8 = arith.constant 0 : index
    %c0_9 = arith.constant 0 : index
    %14 = vector.load %arg4[%c0_7, %c0_8, %c0_9] : memref<3x8x8xf32, #tpu.memory_space<vmem>>, vector<1x8x8xf32>
    %15 = vector.shape_cast %14 : vector<1x8x8xf32> to vector<8x8xf32>
    %16 = vector.extract_strided_slice %13 {offsets = [0, 0], sizes = [8, 16], strides = [1, 1]} : vector<8x18xf32> to vector<8x16xf32>
    %cst_10 = arith.constant dense<0.000000e+00> : vector<8x16xf32>
    %17 = tpu.matmul %15, %16, %cst_10 {dimension_numbers = #tpu.dot_dimension_numbers<[1], [0], [0], [1], [0, 0, 1, 1], [], []>} : vector<8x8xf32>, vector<8x16xf32>, vector<8x16xf32> -> vector<8x16xf32>
    %c1 = arith.constant 1 : index
    %c0_11 = arith.constant 0 : index
    %c0_12 = arith.constant 0 : index
    %18 = vector.load %arg4[%c1, %c0_11, %c0_12] : memref<3x8x8xf32, #tpu.memory_space<vmem>>, vector<1x8x8xf32>
    %19 = vector.shape_cast %18 : vector<1x8x8xf32> to vector<8x8xf32>
    %20 = vector.extract_strided_slice %13 {offsets = [0, 1], sizes = [8, 16], strides = [1, 1]} : vector<8x18xf32> to vector<8x16xf32>
    %cst_13 = arith.constant dense<0.000000e+00> : vector<8x16xf32>
    %21 = tpu.matmul %19, %20, %cst_13 {dimension_numbers = #tpu.dot_dimension_numbers<[1], [0], [0], [1], [0, 0, 1, 1], [], []>} : vector<8x8xf32>, vector<8x16xf32>, vector<8x16xf32> -> vector<8x16xf32>
    %22 = arith.addf %17, %21 : vector<8x16xf32>
    %c2 = arith.constant 2 : index
    %c0_14 = arith.constant 0 : index
    %c0_15 = arith.constant 0 : index
    %23 = vector.load %arg4[%c2, %c0_14, %c0_15] : memref<3x8x8xf32, #tpu.memory_space<vmem>>, vector<1x8x8xf32>
    %24 = vector.shape_cast %23 : vector<1x8x8xf32> to vector<8x8xf32>
    %25 = vector.extract_strided_slice %13 {offsets = [0, 2], sizes = [8, 16], strides = [1, 1]} : vector<8x18xf32> to vector<8x16xf32>
    %cst_16 = arith.constant dense<0.000000e+00> : vector<8x16xf32>
    %26 = tpu.matmul %24, %25, %cst_16 {dimension_numbers = #tpu.dot_dimension_numbers<[1], [0], [0], [1], [0, 0, 1, 1], [], []>} : vector<8x8xf32>, vector<8x16xf32>, vector<8x16xf32> -> vector<8x16xf32>
    %27 = arith.addf %22, %26 : vector<8x16xf32>
    %c0_17 = arith.constant 0 : index
    %c0_18 = arith.constant 0 : index
    %28 = vector.load %arg5[%c0_17, %c0_18] : memref<8x1xf32, #tpu.memory_space<vmem>>, vector<8x1xf32>
    %29 = vector.broadcast %28 : vector<8x1xf32> to vector<8x16xf32>
    %30 = arith.addf %27, %29 : vector<8x16xf32>
    %cst_19 = arith.constant 0.000000e+00 : f32
    %31 = vector.broadcast %cst_19 : f32 to vector<8x16xf32>
    %32 = arith.maximumf %30, %31 : vector<8x16xf32>
    %c0_20 = arith.constant 0 : index
    %c0_21 = arith.constant 0 : index
    %33 = vector.load %arg6[%c0_20, %c0_21] : memref<32x8xf32, #tpu.memory_space<vmem>>, vector<32x8xf32>
    %cst_22 = arith.constant dense<0.000000e+00> : vector<32x16xf32>
    %34 = tpu.matmul %33, %32, %cst_22 {dimension_numbers = #tpu.dot_dimension_numbers<[1], [0], [0], [1], [0, 0, 1, 1], [], []>} : vector<32x8xf32>, vector<8x16xf32>, vector<32x16xf32> -> vector<32x16xf32>
    %c0_23 = arith.constant 0 : index
    %c0_24 = arith.constant 0 : index
    %35 = vector.load %arg7[%c0_23, %c0_24] : memref<32x1xf32, #tpu.memory_space<vmem>>, vector<32x1xf32>
    %36 = vector.broadcast %35 : vector<32x1xf32> to vector<32x16xf32>
    %37 = arith.addf %34, %36 : vector<32x16xf32>
    %38 = arith.addf %37, %1 : vector<32x16xf32>
    %cst_25 = arith.constant 0.000000e+00 : f32
    %39 = vector.broadcast %cst_25 : f32 to vector<32x16xf32>
    %40 = arith.maximumf %38, %39 : vector<32x16xf32>
    %c0_26 = arith.constant 0 : index
    %c0_27 = arith.constant 0 : index
    %c0_28 = arith.constant 0 : index
    %41 = vector.load %arg8[%c0_26, %c0_27, %c0_28] : memref<1x32x16xf32, #tpu.memory_space<vmem>>, vector<1x32x16xf32>
    %42 = vector.shape_cast %41 : vector<1x32x16xf32> to vector<32x16xf32>
    %43 = vector.shape_cast %40 : vector<32x16xf32> to vector<1x32x16xf32>
    tpu.vector_store %arg8[%c0_26, %c0_27, %c0_28], %43 {strides = array<i32>} : memref<1x32x16xf32, #tpu.memory_space<vmem>>, vector<1x32x16xf32>,
    return
  }
  func.func @transform_0(%arg0: i32) -> (i32, i32, i32) {
    %c0_i32 = arith.constant 0 : i32
    %c0_i32_0 = arith.constant 0 : i32
    %c0_i32_1 = arith.constant 0 : i32
    return %arg0, %c0_i32, %c0_i32_0 : i32, i32, i32
  }
  func.func @transform_1(%arg0: i32) -> (i32, i32) {
    %c0_i32 = arith.constant 0 : i32
    %c0_i32_0 = arith.constant 0 : i32
    %c0_i32_1 = arith.constant 0 : i32
    return %c0_i32, %c0_i32_0 : i32, i32
  }
  func.func @transform_2(%arg0: i32) -> (i32, i32) {
    %c0_i32 = arith.constant 0 : i32
    %c0_i32_0 = arith.constant 0 : i32
    %c0_i32_1 = arith.constant 0 : i32
    return %c0_i32, %c0_i32_0 : i32, i32
  }
  func.func @transform_3(%arg0: i32) -> (i32, i32, i32) {
    %c0_i32 = arith.constant 0 : i32
    %c0_i32_0 = arith.constant 0 : i32
    %c0_i32_1 = arith.constant 0 : i32
    %c0_i32_2 = arith.constant 0 : i32
    return %c0_i32, %c0_i32_0, %c0_i32_1 : i32, i32, i32
  }
  func.func @transform_4(%arg0: i32) -> (i32, i32) {
    %c0_i32 = arith.constant 0 : i32
    %c0_i32_0 = arith.constant 0 : i32
    %c0_i32_1 = arith.constant 0 : i32
    return %c0_i32, %c0_i32_0 : i32, i32
  }
  func.func @transform_5(%arg0: i32) -> (i32, i32) {
    %c0_i32 = arith.constant 0 : i32
    %c0_i32_0 = arith.constant 0 : i32
    %c0_i32_1 = arith.constant 0 : i32
    return %c0_i32, %c0_i32_0 : i32, i32
  }
  func.func @transform_6(%arg0: i32) -> (i32, i32) {
    %c0_i32 = arith.constant 0 : i32
    %c0_i32_0 = arith.constant 0 : i32
    %c0_i32_1 = arith.constant 0 : i32
    return %c0_i32, %c0_i32_0 : i32, i32
  }
  func.func @transform_7(%arg0: i32) -> (i32, i32, i32) {
    %c0_i32 = arith.constant 0 : i32
    %c0_i32_0 = arith.constant 0 : i32
    %c0_i32_1 = arith.constant 0 : i32
    return %arg0, %c0_i32, %c0_i32_0 : i32, i32, i32
  }
}

module attributes {stable_mosaic.version = 11 : i64} {
  func.func @bottleneck_kernel(%arg0: i32, %arg1: memref<1x32x16xf32, #tpu.memory_space<vmem>>, %arg2: memref<8x32xf32, #tpu.memory_space<vmem>>, %arg3: memref<8x1xf32, #tpu.memory_space<vmem>>, %arg4: memref<3x8x8xf32, #tpu.memory_space<vmem>>, %arg5: memref<8x1xf32, #tpu.memory_space<vmem>>, %arg6: memref<32x8xf32, #tpu.memory_space<vmem>>, %arg7: memref<32x1xf32, #tpu.memory_space<vmem>>, %arg8: memref<1x32x16xf32, #tpu.memory_space<vmem>>) attributes {dimension_semantics = [#tpu.dimension_semantics<parallel>], iteration_bounds = array<i64: 4>, scalar_prefetch = 0 : i64, scratch_operands = 0 : i64, tpu.core_type = #tpu.core_type<tc>, window_params = [{transform_indices = @transform_0, window_bounds = array<i64: 1, 32, 16>}, {pipeline_mode = #tpu.pipeline_mode<synchronous>, transform_indices = @transform_1, window_bounds = array<i64: 8, 32>}, {pipeline_mode = #tpu.pipeline_mode<synchronous>, transform_indices = @transform_2, window_bounds = array<i64: 8, 1>}, {pipeline_mode = #tpu.pipeline_mode<synchronous>, transform_indices = @transform_3, window_bounds = array<i64: 3, 8, 8>}, {pipeline_mode = #tpu.pipeline_mode<synchronous>, transform_indices = @transform_4, window_bounds = array<i64: 8, 1>}, {pipeline_mode = #tpu.pipeline_mode<synchronous>, transform_indices = @transform_5, window_bounds = array<i64: 32, 8>}, {pipeline_mode = #tpu.pipeline_mode<synchronous>, transform_indices = @transform_6, window_bounds = array<i64: 32, 1>}, {transform_indices = @transform_7, window_bounds = array<i64: 1, 32, 16>}]} {
    %c0 = arith.constant 0 : index
    %c0_0 = arith.constant 0 : index
    %c0_1 = arith.constant 0 : index
    %0 = vector.load %arg1[%c0, %c0_0, %c0_1] : memref<1x32x16xf32, #tpu.memory_space<vmem>>, vector<1x32x16xf32>
    %1 = vector.shape_cast %0 : vector<1x32x16xf32> to vector<32x16xf32>
    %c0_2 = arith.constant 0 : index
    %c0_3 = arith.constant 0 : index
    %2 = vector.load %arg2[%c0_2, %c0_3] : memref<8x32xf32, #tpu.memory_space<vmem>>, vector<8x32xf32>
    %cst = arith.constant dense<0.000000e+00> : vector<8x16xf32>
    %3 = tpu.matmul %2, %1, %cst {dimension_numbers = #tpu.dot_dimension_numbers<[1], [0], [0], [1], [0, 0, 1, 1], [], []>} : vector<8x32xf32>, vector<32x16xf32>, vector<8x16xf32> -> vector<8x16xf32>
    %c0_4 = arith.constant 0 : index
    %c0_5 = arith.constant 0 : index
    %4 = vector.load %arg3[%c0_4, %c0_5] : memref<8x1xf32, #tpu.memory_space<vmem>>, vector<8x1xf32>
    %5 = vector.broadcast %4 : vector<8x1xf32> to vector<8x16xf32>
    %6 = arith.addf %3, %5 : vector<8x16xf32>
    %cst_6 = arith.constant 0.000000e+00 : f32
    %7 = vector.broadcast %cst_6 : f32 to vector<8x16xf32>
    %8 = arith.maximumf %6, %7 : vector<8x16xf32>
    %c0_i32 = arith.constant 0 : i32
    %9 = arith.sitofp %c0_i32 : i32 to f32
    %10 = vector.broadcast %9 : f32 to vector<8x1xf32>
    %11 = tpu.concatenate %10, %8 in 1 : vector<8x1xf32>, vector<8x16xf32> -> vector<8x17xf32>
    %12 = vector.broadcast %9 : f32 to vector<8x1xf32>
    %13 = tpu.concatenate %11, %12 in 1 : vector<8x17xf32>, vector<8x1xf32> -> vector<8x18xf32>
    %c0_7 = arith.constant 0 : index
    %c0_8 = arith.constant 0 : index
    %c0_9 = arith.constant 0 : index
    %14 = vector.load %arg4[%c0_7, %c0_8, %c0_9] : memref<3x8x8xf32, #tpu.memory_space<vmem>>, vector<1x8x8xf32>
    %15 = vector.shape_cast %14 : vector<1x8x8xf32> to vector<8x8xf32>
    %16 = vector.extract_strided_slice %13 {offsets = [0, 0], sizes = [8, 16], strides = [1, 1]} : vector<8x18xf32> to vector<8x16xf32>
    %cst_10 = arith.constant dense<0.000000e+00> : vector<8x16xf32>
    %17 = tpu.matmul %15, %16, %cst_10 {dimension_numbers = #tpu.dot_dimension_numbers<[1], [0], [0], [1], [0, 0, 1, 1], [], []>} : vector<8x8xf32>, vector<8x16xf32>, vector<8x16xf32> -> vector<8x16xf32>
    %c1 = arith.constant 1 : index
    %c0_11 = arith.constant 0 : index
    %c0_12 = arith.constant 0 : index
    %18 = vector.load %arg4[%c1, %c0_11, %c0_12] : memref<3x8x8xf32, #tpu.memory_space<vmem>>, vector<1x8x8xf32>
    %19 = vector.shape_cast %18 : vector<1x8x8xf32> to vector<8x8xf32>
    %20 = vector.extract_strided_slice %13 {offsets = [0, 1], sizes = [8, 16], strides = [1, 1]} : vector<8x18xf32> to vector<8x16xf32>
    %cst_13 = arith.constant dense<0.000000e+00> : vector<8x16xf32>
    %21 = tpu.matmul %19, %20, %cst_13 {dimension_numbers = #tpu.dot_dimension_numbers<[1], [0], [0], [1], [0, 0, 1, 1], [], []>} : vector<8x8xf32>, vector<8x16xf32>, vector<8x16xf32> -> vector<8x16xf32>
    %22 = arith.addf %17, %21 : vector<8x16xf32>
    %c2 = arith.constant 2 : index
    %c0_14 = arith.constant 0 : index
    %c0_15 = arith.constant 0 : index
    %23 = vector.load %arg4[%c2, %c0_14, %c0_15] : memref<3x8x8xf32, #tpu.memory_space<vmem>>, vector<1x8x8xf32>
    %24 = vector.shape_cast %23 : vector<1x8x8xf32> to vector<8x8xf32>
    %25 = vector.extract_strided_slice %13 {offsets = [0, 2], sizes = [8, 16], strides = [1, 1]} : vector<8x18xf32> to vector<8x16xf32>
    %cst_16 = arith.constant dense<0.000000e+00> : vector<8x16xf32>
    %26 = tpu.matmul %24, %25, %cst_16 {dimension_numbers = #tpu.dot_dimension_numbers<[1], [0], [0], [1], [0, 0, 1, 1], [], []>} : vector<8x8xf32>, vector<8x16xf32>, vector<8x16xf32> -> vector<8x16xf32>
    %27 = arith.addf %22, %26 : vector<8x16xf32>
    %c0_17 = arith.constant 0 : index
    %c0_18 = arith.constant 0 : index
    %28 = vector.load %arg5[%c0_17, %c0_18] : memref<8x1xf32, #tpu.memory_space<vmem>>, vector<8x1xf32>
    %29 = vector.broadcast %28 : vector<8x1xf32> to vector<8x16xf32>
    %30 = arith.addf %27, %29 : vector<8x16xf32>
    %cst_19 = arith.constant 0.000000e+00 : f32
    %31 = vector.broadcast %cst_19 : f32 to vector<8x16xf32>
    %32 = arith.maximumf %30, %31 : vector<8x16xf32>
    %c0_20 = arith.constant 0 : index
    %c0_21 = arith.constant 0 : index
    %33 = vector.load %arg6[%c0_20, %c0_21] : memref<32x8xf32, #tpu.memory_space<vmem>>, vector<32x8xf32>
    %cst_22 = arith.constant dense<0.000000e+00> : vector<32x16xf32>
    %34 = tpu.matmul %33, %32, %cst_22 {dimension_numbers = #tpu.dot_dimension_numbers<[1], [0], [0], [1], [0, 0, 1, 1], [], []>} : vector<32x8xf32>, vector<8x16xf32>, vector<32x16xf32> -> vector<32x16xf32>
    %c0_23 = arith.constant 0 : index
    %c0_24 = arith.constant 0 : index
    %35 = vector.load %arg7[%c0_23, %c0_24] : memref<32x1xf32, #tpu.memory_space<vmem>>, vector<32x1xf32>
    %36 = vector.broadcast %35 : vector<32x1xf32> to vector<32x16xf32>
    %37 = arith.addf %34, %36 : vector<32x16xf32>
    %38 = arith.addf %37, %1 : vector<32x16xf32>
    %cst_25 = arith.constant 0.000000e+00 : f32
    %39 = vector.broadcast %cst_25 : f32 to vector<32x16xf32>
    %40 = arith.maximumf %38, %39 : vector<32x16xf32>
    %c0_26 = arith.constant 0 : index
    %c0_27 = arith.constant 0 : index
    %c0_28 = arith.constant 0 : index
    %41 = vector.load %arg8[%c0_26, %c0_27, %c0_28] : memref<1x32x16xf32, #tpu.memory_space<vmem>>, vector<1x32x16xf32>
    %42 = vector.shape_cast %41 : vector<1x32x16xf32> to vector<32x16xf32>
    %43 = vector.shape_cast %40 : vector<32x16xf32> to vector<1x32x16xf32>
    tpu.vector_store %arg8[%c0_26, %c0_27, %c0_28], %43 {strides = array<i32>} : memref<1x32x16xf32, #tpu.memory_space<vmem>>, vector<1x32x16xf32>,
    return
  }
  func.func @transform_0(%arg0: i32) -> (i32, i32, i32) {
    %c0_i32 = arith.constant 0 : i32
    %c0_i32_0 = arith.constant 0 : i32
    %c0_i32_1 = arith.constant 0 : i32
    return %arg0, %c0_i32, %c0_i32_0 : i32, i32, i32
  }
  func.func @transform_1(%arg0: i32) -> (i32, i32) {
    %c0_i32 = arith.constant 0 : i32
    %c0_i32_0 = arith.constant 0 : i32
    %c0_i32_1 = arith.constant 0 : i32
    return %c0_i32, %c0_i32_0 : i32, i32
  }
  func.func @transform_2(%arg0: i32) -> (i32, i32) {
    %c0_i32 = arith.constant 0 : i32
    %c0_i32_0 = arith.constant 0 : i32
    %c0_i32_1 = arith.constant 0 : i32
    return %c0_i32, %c0_i32_0 : i32, i32
  }
  func.func @transform_3(%arg0: i32) -> (i32, i32, i32) {
    %c0_i32 = arith.constant 0 : i32
    %c0_i32_0 = arith.constant 0 : i32
    %c0_i32_1 = arith.constant 0 : i32
    %c0_i32_2 = arith.constant 0 : i32
    return %c0_i32, %c0_i32_0, %c0_i32_1 : i32, i32, i32
  }
  func.func @transform_4(%arg0: i32) -> (i32, i32) {
    %c0_i32 = arith.constant 0 : i32
    %c0_i32_0 = arith.constant 0 : i32
    %c0_i32_1 = arith.constant 0 : i32
    return %c0_i32, %c0_i32_0 : i32, i32
  }
  func.func @transform_5(%arg0: i32) -> (i32, i32) {
    %c0_i32 = arith.constant 0 : i32
    %c0_i32_0 = arith.constant 0 : i32
    %c0_i32_1 = arith.constant 0 : i32
    return %c0_i32, %c0_i32_0 : i32, i32
  }
  func.func @transform_6(%arg0: i32) -> (i32, i32) {
    %c0_i32 = arith.constant 0 : i32
    %c0_i32_0 = arith.constant 0 : i32
    %c0_i32_1 = arith.constant 0 : i32
    return %c0_i32, %c0_i32_0 : i32, i32
  }
  func.func @transform_7(%arg0: i32) -> (i32, i32, i32) {
    %c0_i32 = arith.constant 0 : i32
    %c0_i32_0 = arith.constant 0 : i32
    %c0_i32_1 = arith.constant 0 : i32
    return %arg0, %c0_i32, %c0_i32_0 : i32, i32, i32
  }
}

</mosaic_0001>

<llo_original>
// kernel: tpu_custom_call.1
$region0: #{tpu_custom_call.1}
  #allocation0 [shape = 'u32[]', space=smem, size = 0x4, offset = 0x4, fixed_abs, tag = 'smem constant byte address 0x4 - core index']
  #allocation1 [shape = 'u32[144,128]{1,0:T(1,128)}', space=vmem, size = 0x12000, scoped, tag = 'internal scratch']
  %s0 = inlined_call_operand.vmem [shape: f32[4,32,16], index: 0, kind: input, shape index: {}]
  %s1 = inlined_call_operand.vmem [shape: f32[8,32], index: 1, kind: input, shape index: {}]
  %s2 = inlined_call_operand.vmem [shape: f32[8,1], index: 2, kind: input, shape index: {}]
  %s3 = inlined_call_operand.vmem [shape: f32[3,8,8], index: 3, kind: input, shape index: {}]
  %s4 = inlined_call_operand.vmem [shape: f32[8,1], index: 4, kind: input, shape index: {}]
  %s5 = inlined_call_operand.vmem [shape: f32[32,8], index: 5, kind: input, shape index: {}]
  %s6 = inlined_call_operand.vmem [shape: f32[32,1], index: 6, kind: input, shape index: {}]
  %s7 = inlined_call_operand.vmem [shape: f32[4,32,16], index: 7, kind: output, shape index: {}]
  %s8 = sld [smem:[#allocation0]]
  $region61: #{tpu_custom_call.1} parent=0
    _
  %s10 = ssub.s32 1, %s8
  %s11 = scalar_select 0, %s10, %s8
  loop: start=0, step=1, limit=6
  $region2: #{tpu_custom_call.1} parent=0 // loop_pre_header
    _
  $region3: #{tpu_custom_call.1} parent=0 // loop_header
    %s13 = sphi 0, %s17
    %p14 = scmp.ge.s32.totalorder %s13, 6
    %s23 = sphi 0, %s25
    %s26 = sphi 0, %s23
    %s27 = sphi 0, %s26
    %s43 = sphi 0, %s27
    %s47 = sphi 0, %s47
    %s49 = sphi 0, %s47
    %s50 = sphi 0, %s49
    %s64 = sphi 0, %s50
    %s68 = sphi 0, %s68
    %s70 = sphi 0, %s68
    %s71 = sphi 0, %s70
    %s85 = sphi 0, %s71
    %s89 = sphi 0, %s89
    %s91 = sphi 0, %s89
    %s92 = sphi 0, %s91
    %s106 = sphi 0, %s92
    %s110 = sphi 0, %s110
    %s112 = sphi 0, %s110
    %s113 = sphi 0, %s112
    %s127 = sphi 0, %s113
    %s131 = sphi 0, %s131
    %s133 = sphi 0, %s131
    %s134 = sphi 0, %s133
    %s148 = sphi 0, %s134
    %s152 = sphi 0, %s152
    %s154 = sphi 0, %s152
    %s155 = sphi 0, %s154
    %s169 = sphi 0, %s155
    %s175 = sphi 0, %s177
    %s178 = sphi 0, %s175
    %s179 = sphi 0, %s178
    %s195 = sphi 0, %s179
  $region4: #{tpu_custom_call.1} parent=0 // loop_header_branch
    %16 = sbr.rel (%p14) target = $region8
  $region5: #{tpu_custom_call.1} parent=0 // loop_body
    %s18 = ssub.s32 %s13, 1
    %s19 = ssub.s32 %s13, 2
    %s20 = sadd.s32 %s13, 1
    %s21 = ssub.s32 %s13, %s20
    %p22 = scmp.eq.s32.totalorder %s21, 0
    %s24 = sadd.s32 %s23, 1
    %s25 = scalar_select %p22, %s23, %s24
    %p28 = pneg %p22
    %p29 = scmp.eq.s32.totalorder %s13, 3
    %p30 = por %p28, %p29
    %p31 = scmp.ne.s32.totalorder %s23, %s26
    %p32 = scmp.eq.s32.totalorder %s13, 0
    %p33 = por %p31, %p32
    %p34 = scmp.ne.s32.totalorder %s23, %s26
    %p35 = scmp.eq.s32.totalorder %s18, 3
    %p36 = por %p34, %p35
    %p37 = scmp.ne.s32.totalorder %s26, %s27
    %p38 = scmp.eq.s32.totalorder %s18, 0
    %p39 = por %p37, %p38
    %p40 = scmp.ne.s32.totalorder %s26, %s27
    %p41 = scmp.eq.s32.totalorder %s19, 3
    %p42 = por %p40, %p41
    %p44 = scmp.ne.s32.totalorder %s27, %s43
    %p45 = scmp.eq.s32.totalorder %s19, 0
    %p46 = por %p44, %p45
    %s48 = sadd.s32 %s47, 1
    %p51 = scmp.eq.s32.totalorder %s13, 3
    %p52 = scmp.ne.s32.totalorder %s47, %s49
    %p53 = scmp.eq.s32.totalorder %s13, 0
    %p54 = por %p52, %p53
    %p55 = scmp.ne.s32.totalorder %s47, %s49
    %p56 = scmp.eq.s32.totalorder %s18, 3
    %p57 = por %p55, %p56
    %p58 = scmp.ne.s32.totalorder %s49, %s50
    %p59 = scmp.eq.s32.totalorder %s18, 0
    %p60 = por %p58, %p59
    %p61 = scmp.ne.s32.totalorder %s49, %s50
    %p62 = scmp.eq.s32.totalorder %s19, 3
    %p63 = por %p61, %p62
    %p65 = scmp.ne.s32.totalorder %s50, %s64
    %p66 = scmp.eq.s32.totalorder %s19, 0
    %p67 = por %p65, %p66
    %s69 = sadd.s32 %s68, 1
    %p72 = scmp.eq.s32.totalorder %s13, 3
    %p73 = scmp.ne.s32.totalorder %s68, %s70
    %p74 = scmp.eq.s32.totalorder %s13, 0
    %p75 = por %p73, %p74
    %p76 = scmp.ne.s32.totalorder %s68, %s70
    %p77 = scmp.eq.s32.totalorder %s18, 3
    %p78 = por %p76, %p77
    %p79 = scmp.ne.s32.totalorder %s70, %s71
    %p80 = scmp.eq.s32.totalorder %s18, 0
    %p81 = por %p79, %p80
    %p82 = scmp.ne.s32.totalorder %s70, %s71
    %p83 = scmp.eq.s32.totalorder %s19, 3
    %p84 = por %p82, %p83
    %p86 = scmp.ne.s32.totalorder %s71, %s85
    %p87 = scmp.eq.s32.totalorder %s19, 0
    %p88 = por %p86, %p87
    %s90 = sadd.s32 %s89, 1
    %p93 = scmp.eq.s32.totalorder %s13, 3
    %p94 = scmp.ne.s32.totalorder %s89, %s91
    %p95 = scmp.eq.s32.totalorder %s13, 0
    %p96 = por %p94, %p95
    %p97 = scmp.ne.s32.totalorder %s89, %s91
    %p98 = scmp.eq.s32.totalorder %s18, 3
    %p99 = por %p97, %p98
    %p100 = scmp.ne.s32.totalorder %s91, %s92
    %p101 = scmp.eq.s32.totalorder %s18, 0
    %p102 = por %p100, %p101
    %p103 = scmp.ne.s32.totalorder %s91, %s92
    %p104 = scmp.eq.s32.totalorder %s19, 3
    %p105 = por %p103, %p104
    %p107 = scmp.ne.s32.totalorder %s92, %s106
    %p108 = scmp.eq.s32.totalorder %s19, 0
    %p109 = por %p107, %p108
    %s111 = sadd.s32 %s110, 1
    %p114 = scmp.eq.s32.totalorder %s13, 3
    %p115 = scmp.ne.s32.totalorder %s110, %s112
    %p116 = scmp.eq.s32.totalorder %s13, 0
    %p117 = por %p115, %p116
    %p118 = scmp.ne.s32.totalorder %s110, %s112
    %p119 = scmp.eq.s32.totalorder %s18, 3
    %p120 = por %p118, %p119
    %p121 = scmp.ne.s32.totalorder %s112, %s113
    %p122 = scmp.eq.s32.totalorder %s18, 0
    %p123 = por %p121, %p122
    %p124 = scmp.ne.s32.totalorder %s112, %s113
    %p125 = scmp.eq.s32.totalorder %s19, 3
    %p126 = por %p124, %p125
    %p128 = scmp.ne.s32.totalorder %s113, %s127
    %p129 = scmp.eq.s32.totalorder %s19, 0
    %p130 = por %p128, %p129
    %s132 = sadd.s32 %s131, 1
    %p135 = scmp.eq.s32.totalorder %s13, 3
    %p136 = scmp.ne.s32.totalorder %s131, %s133
    %p137 = scmp.eq.s32.totalorder %s13, 0
    %p138 = por %p136, %p137
    %p139 = scmp.ne.s32.totalorder %s131, %s133
    %p140 = scmp.eq.s32.totalorder %s18, 3
    %p141 = por %p139, %p140
    %p142 = scmp.ne.s32.totalorder %s133, %s134
    %p143 = scmp.eq.s32.totalorder %s18, 0
    %p144 = por %p142, %p143
    %p145 = scmp.ne.s32.totalorder %s133, %s134
    %p146 = scmp.eq.s32.totalorder %s19, 3
    %p147 = por %p145, %p146
    %p149 = scmp.ne.s32.totalorder %s134, %s148
    %p150 = scmp.eq.s32.totalorder %s19, 0
    %p151 = por %p149, %p150
    %s153 = sadd.s32 %s152, 1
    %p156 = scmp.eq.s32.totalorder %s13, 3
    %p157 = scmp.ne.s32.totalorder %s152, %s154
    %p158 = scmp.eq.s32.totalorder %s13, 0
    %p159 = por %p157, %p158
    %p160 = scmp.ne.s32.totalorder %s152, %s154
    %p161 = scmp.eq.s32.totalorder %s18, 3
    %p162 = por %p160, %p161
    %p163 = scmp.ne.s32.totalorder %s154, %s155
    %p164 = scmp.eq.s32.totalorder %s18, 0
    %p165 = por %p163, %p164
    %p166 = scmp.ne.s32.totalorder %s154, %s155
    %p167 = scmp.eq.s32.totalorder %s19, 3
    %p168 = por %p166, %p167
    %p170 = scmp.ne.s32.totalorder %s155, %s169
    %p171 = scmp.eq.s32.totalorder %s19, 0
    %p172 = por %p170, %p171
    %s173 = ssub.s32 %s13, %s20
    %p174 = scmp.eq.s32.totalorder %s173, 0
    %s176 = sadd.s32 %s175, 1
    %s177 = scalar_select %p174, %s175, %s176
    %p180 = pneg %p174
    %p181 = scmp.eq.s32.totalorder %s13, 3
    %p182 = por %p180, %p181
    %p183 = scmp.ne.s32.totalorder %s175, %s178
    %p184 = scmp.eq.s32.totalorder %s13, 0
    %p185 = por %p183, %p184
    %p186 = scmp.ne.s32.totalorder %s175, %s178
    %p187 = scmp.eq.s32.totalorder %s18, 3
    %p188 = por %p186, %p187
    %p189 = scmp.ne.s32.totalorder %s178, %s179
    %p190 = scmp.eq.s32.totalorder %s18, 0
    %p191 = por %p189, %p190
    %p192 = scmp.ne.s32.totalorder %s178, %s179
    %p193 = scmp.eq.s32.totalorder %s19, 3
    %p194 = por %p192, %p193
    %p196 = scmp.ne.s32.totalorder %s179, %s195
    %p197 = scmp.eq.s32.totalorder %s19, 0
    %p198 = por %p196, %p197
    %p199 = scmp.le.s32.totalorder 1, %s13
    %p200 = scmp.lt.s32.totalorder %s13, 5
    %p201 = pnand %p199, %p200
    %p202 = pneg %p201
    // Predicated region
    $region9: #{tpu_custom_call.1} parent=5 // pred_check
      _
    $region10: #{tpu_custom_call.1} parent=5 // pred_check_branch
      %204 = sbr.rel (%p201) target = $region12
    $region11: #{tpu_custom_call.1} parent=5 // pred_region
      %s205 = ssub.s32 %s13, 1
      // Predicated region
      $region13: #{tpu_custom_call.1} parent=11 // pred_check
        %p206 = pneg %p60
      $region14: #{tpu_custom_call.1} parent=11 // pred_check_branch
        %208 = sbr.rel (%p206) target = $region16
      $region15: #{tpu_custom_call.1} parent=11 // pred_region
        _
      $region16: #{tpu_custom_call.1} parent=11 // pred_fallthru
        _
      // Predicated region
      $region17: #{tpu_custom_call.1} parent=11 // pred_check
        %p209 = pneg %p81
      $region18: #{tpu_custom_call.1} parent=11 // pred_check_branch
        %211 = sbr.rel (%p209) target = $region20
      $region19: #{tpu_custom_call.1} parent=11 // pred_region
        _
      $region20: #{tpu_custom_call.1} parent=11 // pred_fallthru
        _
      // Predicated region
      $region21: #{tpu_custom_call.1} parent=11 // pred_check
        %p212 = pneg %p102
      $region22: #{tpu_custom_call.1} parent=11 // pred_check_branch
        %214 = sbr.rel (%p212) target = $region24
      $region23: #{tpu_custom_call.1} parent=11 // pred_region
        _
      $region24: #{tpu_custom_call.1} parent=11 // pred_fallthru
        _
      // Predicated region
      $region25: #{tpu_custom_call.1} parent=11 // pred_check
        %p215 = pneg %p123
      $region26: #{tpu_custom_call.1} parent=11 // pred_check_branch
        %217 = sbr.rel (%p215) target = $region28
      $region27: #{tpu_custom_call.1} parent=11 // pred_region
        _
      $region28: #{tpu_custom_call.1} parent=11 // pred_fallthru
        _
      // Predicated region
      $region29: #{tpu_custom_call.1} parent=11 // pred_check
        %p218 = pneg %p144
      $region30: #{tpu_custom_call.1} parent=11 // pred_check_branch
        %220 = sbr.rel (%p218) target = $region32
      $region31: #{tpu_custom_call.1} parent=11 // pred_region
        _
      $region32: #{tpu_custom_call.1} parent=11 // pred_fallthru
        _
      // Predicated region
      $region33: #{tpu_custom_call.1} parent=11 // pred_check
        %p221 = pneg %p165
      $region34: #{tpu_custom_call.1} parent=11 // pred_check_branch
        %223 = sbr.rel (%p221) target = $region36
      $region35: #{tpu_custom_call.1} parent=11 // pred_region
        _
      $region36: #{tpu_custom_call.1} parent=11 // pred_fallthru
        _
    $region12: #{tpu_custom_call.1} parent=5 // pred_fallthru
      _
    %p224 = scmp.lt.s32.totalorder %s13, 4
    // Predicated region
    $region37: #{tpu_custom_call.1} parent=5 // pred_check
      %p225 = pneg %p224
    $region38: #{tpu_custom_call.1} parent=5 // pred_check_branch
      %227 = sbr.rel (%p225) target = $region40
    $region39: #{tpu_custom_call.1} parent=5 // pred_region
      // Predicated region
      $region41: #{tpu_custom_call.1} parent=39 // pred_check
        %p228 = pneg %p33
      $region42: #{tpu_custom_call.1} parent=39 // pred_check_branch
        %230 = sbr.rel (%p228) target = $region44
      $region43: #{tpu_custom_call.1} parent=39 // pred_region
        %p231 = scmp.lt.s32.totalorder %s13, 3
        %s232 = scalar_select %p231, %s13, 3
        %s233 = smul.addr %s232, 4
        %s234 = smul.addr %s233, 8
        %s235 = scalar_lea.vmem %s0, %s234
      $region44: #{tpu_custom_call.1} parent=39 // pred_fallthru
        _
    $region40: #{tpu_custom_call.1} parent=5 // pred_fallthru
      _
    %p236 = scmp.le.s32.totalorder 1, %s13
    %p237 = scmp.lt.s32.totalorder %s13, 5
    %p238 = pnand %p236, %p237
    %p239 = pneg %p238
    // Predicated region
    $region45: #{tpu_custom_call.1} parent=5 // pred_check
      _
    $region46: #{tpu_custom_call.1} parent=5 // pred_check_branch
      %241 = sbr.rel (%p238) target = $region48
    $region47: #{tpu_custom_call.1} parent=5 // pred_region
      %s242 = ssub.s32 %s13, 1
      %p243 = scmp.lt.s32.totalorder %s18, 3
      %s244 = scalar_select %p243, %s18, 3
      %s245 = smul.addr %s244, 4
      %s246 = smul.addr %s245, 8
      %s247 = scalar_lea.vmem %s0, %s246
      %p248 = pneg %p39
      %p249 = pneg %p36
      %p250 = pneg %p60
      %p251 = pneg %p57
      %p252 = pneg %p81
      %p253 = pneg %p78
      %p254 = pneg %p102
      %p255 = pneg %p99
      %p256 = pneg %p123
      %p257 = pneg %p120
      %p258 = pneg %p144
      %p259 = pneg %p141
      %p260 = pneg %p165
      %p261 = pneg %p162
      %p262 = pneg %p191
      %p263 = pneg %p188
      %p264 = scmp.lt.s32.totalorder %s18, 3
      %s265 = scalar_select %p264, %s18, 3
      %s266 = smul.addr %s265, 4
      %s267 = smul.addr %s266, 8
      %s268 = scalar_lea.vmem %s7, %s267
      %p269 = scmp.lt.s32.totalorder %s18, 3
      %s270 = scalar_select %p269, %s18, 3
      %s271 = smul.addr %s270, 4
      %s272 = smul.addr %s271, 8
      %s273 = scalar_lea.vmem %s0, %s272
      %p274 = scmp.lt.s32.totalorder %s18, 3
      %s275 = scalar_select %p274, %s18, 3
      %s276 = smul.addr %s275, 4
      %s277 = smul.addr %s276, 8
      %s278 = scalar_lea.vmem %s7, %s277
      %v279 = vld [vmem:[%s273] sm:$0xff]
      %v280 = vld [vmem:[%s273 + $0x8] sm:$0xff]
      %v281 = vld [vmem:[%s273 + $0x10] sm:$0xff]
      %v282 = vld [vmem:[%s273 + $0x18] sm:$0xff]
      %v283 = vld [vmem:[%s1] sm:$0xff]
      %v284 = vld [vmem:[%s2] sm:$0xff]
      %286 = vset.pattern.permute.xlu0 0
      %287 = vperm.xlu0 %286, %v284
      %v288 = vpop.permute.xlu0 %287
      %vm290 = vcmask 261120
      %v292 = vsel %vm290, %v283, 0
      %294 = vmatprep.subr.mxu0 0.0
      %295 = vmatpush1.msra.mxu0 0.0
      %296 = vmatprep.subr.mxu0 0.0
      %297 = vmatpush1.msra.mxu0 0.0
      %298 = vmatprep.subr.mxu0 0.0
      %299 = vmatpush1.msra.mxu0 0.0
      %300 = vmatprep.subr.mxu0 0.0
      %301 = vmatpush1.msra.mxu0 0.0
      %302 = vmatprep.subr.mxu0 0.0
      %303 = vmatpush1.msra.mxu0 0.0
      %304 = vmatprep.subr.mxu0 0.0
      %305 = vmatpush1.msra.mxu0 0.0
      %306 = vmatprep.subr.mxu0 0.0
      %307 = vmatpush1.msra.mxu0 0.0
      %308 = vmatprep.subr.mxu0 0.0
      %309 = vmatpush1.msra.mxu0 0.0
      %310 = vmatprep.subr.mxu0 0.0
      %311 = vmatpush1.msra.mxu0 0.0
      %312 = vmatprep.subr.mxu0 0.0
      %313 = vmatpush1.msra.mxu0 0.0
      %314 = vmatprep.subr.mxu0 0.0
      %315 = vmatpush1.msra.mxu0 0.0
      %316 = vmatprep.subr.mxu0 0.0
      %317 = vmatpush1.msra.mxu0 0.0
      %318 = vmatprep.subr.mxu0 0.0
      %319 = vmatpush1.msra.mxu0 %v282
      %320 = vmatprep.subr.mxu0 0.0
      %321 = vmatpush1.msra.mxu0 %v281
      %322 = vmatprep.subr.mxu0 0.0
      %323 = vmatpush1.msra.mxu0 %v280
      %324 = vmatprep.subr.mxu0 0.0
      %325 = vmatpush1.msra.mxu0 %v279
      %326 = vmatprep.subr.mxu0 0.0
      %327 = vmatpush2.msra.mxu0 0.0
      %328 = vmatprep.subr.mxu0 0.0
      %329 = vmatpush2.msra.mxu0 0.0
      %330 = vmatprep.subr.mxu0 0.0
      %331 = vmatpush2.msra.mxu0 0.0
      %332 = vmatprep.subr.mxu0 0.0
      %333 = vmatpush2.msra.mxu0 0.0
      %334 = vmatprep.subr.mxu0 0.0
      %335 = vmatpush2.msra.mxu0 0.0
      %336 = vmatprep.subr.mxu0 0.0
      %337 = vmatpush2.msra.mxu0 0.0
      %338 = vmatprep.subr.mxu0 0.0
      %339 = vmatpush2.msra.mxu0 0.0
      %340 = vmatprep.subr.mxu0 0.0
      %341 = vmatpush2.msra.mxu0 0.0
      %342 = vmatprep.subr.mxu0 0.0
      %343 = vmatpush2.msra.mxu0 0.0
      %344 = vmatprep.subr.mxu0 0.0
      %345 = vmatpush2.msra.mxu0 0.0
      %346 = vmatprep.subr.mxu0 0.0
      %347 = vmatpush2.msra.mxu0 0.0
      %348 = vmatprep.subr.mxu0 0.0
      %349 = vmatpush2.msra.mxu0 0.0
      %350 = vmatprep.subr.mxu0 0.0
      %351 = vmatpush2.msra.mxu0 0.0
      %352 = vmatprep.subr.mxu0 0.0
      %353 = vmatpush2.msra.mxu0 0.0
      %354 = vmatprep.subr.mxu0 0.0
      %355 = vmatpush2.msra.mxu0 0.0
      %356 = vmatprep.subr.mxu0 0.0
      %357 = vmatpush2.msra.mxu0 0.0
      %358 = vmatprep.mubr.f32.mxu0 0.0
      %359 = vmatmul.mubr.f32.gmra.mxu0 %v292
      %v360 = vpop.f32.mrf.mxu0
      %v361 = vadd.f32 %v288, %v360
      %v362 = vpop.f32.mrf.mxu0
      %363 = vdwg.mxu0
      %v364 = vmax.f32 %v361, 0.0
      %366 = vrot.lane.b32.xlu0 %v364, 1
      %v367 = vpop.permute.xlu0 %366
      %vm369 = vcmask 7168
      %v370 = vsel %vm369, 0.0, %v367
      %vm371 = vcmask 138240
      %v372 = vsel %vm371, %v370, 0.0
      %v373 = vld [vmem:[%s3] sm:$0xff]
      %s374 = scalar_lea.vmem %s3, 8
      %v375 = vld [vmem:[%s374] sm:$0xff]
      %377 = vrot.lane.b32.xlu0 %v372, 127
      %v378 = vpop.permute.xlu0 %377
      %vm380 = vcmask 64512
      %v382 = vsel %vm380, %v375, 0
      %384 = vmatprep.subr.mxu0 0.0
      %385 = vmatpush1.msra.mxu0 0.0
      %386 = vmatprep.subr.mxu0 0.0
      %387 = vmatpush1.msra.mxu0 0.0
      %388 = vmatprep.subr.mxu0 0.0
      %389 = vmatpush1.msra.mxu0 0.0
      %390 = vmatprep.subr.mxu0 0.0
      %391 = vmatpush1.msra.mxu0 0.0
      %392 = vmatprep.subr.mxu0 0.0
      %393 = vmatpush1.msra.mxu0 0.0
      %394 = vmatprep.subr.mxu0 0.0
      %395 = vmatpush1.msra.mxu0 0.0
      %396 = vmatprep.subr.mxu0 0.0
      %397 = vmatpush1.msra.mxu0 0.0
      %398 = vmatprep.subr.mxu0 0.0
      %399 = vmatpush1.msra.mxu0 0.0
      %400 = vmatprep.subr.mxu0 0.0
      %401 = vmatpush1.msra.mxu0 0.0
      %402 = vmatprep.subr.mxu0 0.0
      %403 = vmatpush1.msra.mxu0 0.0
      %404 = vmatprep.subr.mxu0 0.0
      %405 = vmatpush1.msra.mxu0 0.0
      %406 = vmatprep.subr.mxu0 0.0
      %407 = vmatpush1.msra.mxu0 0.0
      %408 = vmatprep.subr.mxu0 0.0
      %409 = vmatpush1.msra.mxu0 0.0
      %410 = vmatprep.subr.mxu0 0.0
      %411 = vmatpush1.msra.mxu0 0.0
      %412 = vmatprep.subr.mxu0 0.0
      %413 = vmatpush1.msra.mxu0 0.0
      %414 = vmatprep.subr.mxu0 0.0
      %415 = vmatpush1.msra.mxu0 %v378
      %416 = vmatprep.subr.mxu0 0.0
      %417 = vmatpush2.msra.mxu0 0.0
      %418 = vmatprep.subr.mxu0 0.0
      %419 = vmatpush2.msra.mxu0 0.0
      %420 = vmatprep.subr.mxu0 0.0
      %421 = vmatpush2.msra.mxu0 0.0
      %422 = vmatprep.subr.mxu0 0.0
      %423 = vmatpush2.msra.mxu0 0.0
      %424 = vmatprep.subr.mxu0 0.0
      %425 = vmatpush2.msra.mxu0 0.0
      %426 = vmatprep.subr.mxu0 0.0
      %427 = vmatpush2.msra.mxu0 0.0
      %428 = vmatprep.subr.mxu0 0.0
      %429 = vmatpush2.msra.mxu0 0.0
      %430 = vmatprep.subr.mxu0 0.0
      %431 = vmatpush2.msra.mxu0 0.0
      %432 = vmatprep.subr.mxu0 0.0
      %433 = vmatpush2.msra.mxu0 0.0
      %434 = vmatprep.subr.mxu0 0.0
      %435 = vmatpush2.msra.mxu0 0.0
      %436 = vmatprep.subr.mxu0 0.0
      %437 = vmatpush2.msra.mxu0 0.0
      %438 = vmatprep.subr.mxu0 0.0
      %439 = vmatpush2.msra.mxu0 0.0
      %440 = vmatprep.subr.mxu0 0.0
      %441 = vmatpush2.msra.mxu0 0.0
      %442 = vmatprep.subr.mxu0 0.0
      %443 = vmatpush2.msra.mxu0 0.0
      %444 = vmatprep.subr.mxu0 0.0
      %445 = vmatpush2.msra.mxu0 0.0
      %446 = vmatprep.subr.mxu0 0.0
      %447 = vmatpush2.msra.mxu0 0.0
      %448 = vmatprep.mubr.f32.mxu0 0.0
      %449 = vmatmul.mubr.f32.gmra.mxu0 %v382
      %v450 = vpop.f32.mrf.mxu0
      %v451 = vadd.f32 0.0, %v450
      %v452 = vpop.f32.mrf.mxu0
      %453 = vdwg.mxu0
      %v455 = vsel %vm380, %v373, 0
      %457 = vmatprep.subr.mxu0 0.0
      %458 = vmatpush1.msra.mxu0 0.0
      %459 = vmatprep.subr.mxu0 0.0
      %460 = vmatpush1.msra.mxu0 0.0
      %461 = vmatprep.subr.mxu0 0.0
      %462 = vmatpush1.msra.mxu0 0.0
      %463 = vmatprep.subr.mxu0 0.0
      %464 = vmatpush1.msra.mxu0 0.0
      %465 = vmatprep.subr.mxu0 0.0
      %466 = vmatpush1.msra.mxu0 0.0
      %467 = vmatprep.subr.mxu0 0.0
      %468 = vmatpush1.msra.mxu0 0.0
      %469 = vmatprep.subr.mxu0 0.0
      %470 = vmatpush1.msra.mxu0 0.0
      %471 = vmatprep.subr.mxu0 0.0
      %472 = vmatpush1.msra.mxu0 0.0
      %473 = vmatprep.subr.mxu0 0.0
      %474 = vmatpush1.msra.mxu0 0.0
      %475 = vmatprep.subr.mxu0 0.0
      %476 = vmatpush1.msra.mxu0 0.0
      %477 = vmatprep.subr.mxu0 0.0
      %478 = vmatpush1.msra.mxu0 0.0
      %479 = vmatprep.subr.mxu0 0.0
      %480 = vmatpush1.msra.mxu0 0.0
      %481 = vmatprep.subr.mxu0 0.0
      %482 = vmatpush1.msra.mxu0 0.0
      %483 = vmatprep.subr.mxu0 0.0
      %484 = vmatpush1.msra.mxu0 0.0
      %485 = vmatprep.subr.mxu0 0.0
      %486 = vmatpush1.msra.mxu0 0.0
      %487 = vmatprep.subr.mxu0 0.0
      %488 = vmatpush1.msra.mxu0 %v372
      %489 = vmatprep.subr.mxu0 0.0
      %490 = vmatpush2.msra.mxu0 0.0
      %491 = vmatprep.subr.mxu0 0.0
      %492 = vmatpush2.msra.mxu0 0.0
      %493 = vmatprep.subr.mxu0 0.0
      %494 = vmatpush2.msra.mxu0 0.0
      %495 = vmatprep.subr.mxu0 0.0
      %496 = vmatpush2.msra.mxu0 0.0
      %497 = vmatprep.subr.mxu0 0.0
      %498 = vmatpush2.msra.mxu0 0.0
      %499 = vmatprep.subr.mxu0 0.0
      %500 = vmatpush2.msra.mxu0 0.0
      %501 = vmatprep.subr.mxu0 0.0
      %502 = vmatpush2.msra.mxu0 0.0
      %503 = vmatprep.subr.mxu0 0.0
      %504 = vmatpush2.msra.mxu0 0.0
      %505 = vmatprep.subr.mxu0 0.0
      %506 = vmatpush2.msra.mxu0 0.0
      %507 = vmatprep.subr.mxu0 0.0
      %508 = vmatpush2.msra.mxu0 0.0
      %509 = vmatprep.subr.mxu0 0.0
      %510 = vmatpush2.msra.mxu0 0.0
      %511 = vmatprep.subr.mxu0 0.0
      %512 = vmatpush2.msra.mxu0 0.0
      %513 = vmatprep.subr.mxu0 0.0
      %514 = vmatpush2.msra.mxu0 0.0
      %515 = vmatprep.subr.mxu0 0.0
      %516 = vmatpush2.msra.mxu0 0.0
      %517 = vmatprep.subr.mxu0 0.0
      %518 = vmatpush2.msra.mxu0 0.0
      %519 = vmatprep.subr.mxu0 0.0
      %520 = vmatpush2.msra.mxu0 0.0
      %521 = vmatprep.mubr.f32.mxu0 0.0
      %522 = vmatmul.mubr.f32.gmra.mxu0 %v455
      %v523 = vpop.f32.mrf.mxu0
      %v524 = vadd.f32 %v451, %v523
      %v525 = vpop.f32.mrf.mxu0
      %526 = vdwg.mxu0
      %s527 = scalar_lea.vmem %s3, 16
      %v528 = vld [vmem:[%s527] sm:$0xff]
      %529 = vrot.lane.b32.xlu0 %v372, 126
      %v530 = vpop.permute.xlu0 %529
      %v533 = vsel %vm380, %v528, 0
      %535 = vmatprep.subr.mxu0 0.0
      %536 = vmatpush1.msra.mxu0 0.0
      %537 = vmatprep.subr.mxu0 0.0
      %538 = vmatpush1.msra.mxu0 0.0
      %539 = vmatprep.subr.mxu0 0.0
      %540 = vmatpush1.msra.mxu0 0.0
      %541 = vmatprep.subr.mxu0 0.0
      %542 = vmatpush1.msra.mxu0 0.0
      %543 = vmatprep.subr.mxu0 0.0
      %544 = vmatpush1.msra.mxu0 0.0
      %545 = vmatprep.subr.mxu0 0.0
      %546 = vmatpush1.msra.mxu0 0.0
      %547 = vmatprep.subr.mxu0 0.0
      %548 = vmatpush1.msra.mxu0 0.0
      %549 = vmatprep.subr.mxu0 0.0
      %550 = vmatpush1.msra.mxu0 0.0
      %551 = vmatprep.subr.mxu0 0.0
      %552 = vmatpush1.msra.mxu0 0.0
      %553 = vmatprep.subr.mxu0 0.0
      %554 = vmatpush1.msra.mxu0 0.0
      %555 = vmatprep.subr.mxu0 0.0
      %556 = vmatpush1.msra.mxu0 0.0
      %557 = vmatprep.subr.mxu0 0.0
      %558 = vmatpush1.msra.mxu0 0.0
      %559 = vmatprep.subr.mxu0 0.0
      %560 = vmatpush1.msra.mxu0 0.0
      %561 = vmatprep.subr.mxu0 0.0
      %562 = vmatpush1.msra.mxu0 0.0
      %563 = vmatprep.subr.mxu0 0.0
      %564 = vmatpush1.msra.mxu0 0.0
      %565 = vmatprep.subr.mxu0 0.0
      %566 = vmatpush1.msra.mxu0 %v530
      %567 = vmatprep.subr.mxu0 0.0
      %568 = vmatpush2.msra.mxu0 0.0
      %569 = vmatprep.subr.mxu0 0.0
      %570 = vmatpush2.msra.mxu0 0.0
      %571 = vmatprep.subr.mxu0 0.0
      %572 = vmatpush2.msra.mxu0 0.0
      %573 = vmatprep.subr.mxu0 0.0
      %574 = vmatpush2.msra.mxu0 0.0
      %575 = vmatprep.subr.mxu0 0.0
      %576 = vmatpush2.msra.mxu0 0.0
      %577 = vmatprep.subr.mxu0 0.0
      %578 = vmatpush2.msra.mxu0 0.0
      %579 = vmatprep.subr.mxu0 0.0
      %580 = vmatpush2.msra.mxu0 0.0
      %581 = vmatprep.subr.mxu0 0.0
      %582 = vmatpush2.msra.mxu0 0.0
      %583 = vmatprep.subr.mxu0 0.0
      %584 = vmatpush2.msra.mxu0 0.0
      %585 = vmatprep.subr.mxu0 0.0
      %586 = vmatpush2.msra.mxu0 0.0
      %587 = vmatprep.subr.mxu0 0.0
      %588 = vmatpush2.msra.mxu0 0.0
      %589 = vmatprep.subr.mxu0 0.0
      %590 = vmatpush2.msra.mxu0 0.0
      %591 = vmatprep.subr.mxu0 0.0
      %592 = vmatpush2.msra.mxu0 0.0
      %593 = vmatprep.subr.mxu0 0.0
      %594 = vmatpush2.msra.mxu0 0.0
      %595 = vmatprep.subr.mxu0 0.0
      %596 = vmatpush2.msra.mxu0 0.0
      %597 = vmatprep.subr.mxu0 0.0
      %598 = vmatpush2.msra.mxu0 0.0
      %599 = vmatprep.mubr.f32.mxu0 0.0
      %600 = vmatmul.mubr.f32.gmra.mxu0 %v533
      %v601 = vpop.f32.mrf.mxu0
      %v602 = vadd.f32 0.0, %v601
      %v603 = vpop.f32.mrf.mxu0
      %604 = vdwg.mxu0
      %v605 = vadd.f32 %v524, %v602
      %v606 = vld [vmem:[%s4] sm:$0xff]
      %608 = vset.pattern.permute.xlu0 0
      %609 = vperm.xlu0 %608, %v606
      %v610 = vpop.permute.xlu0 %609
      %v612 = vadd.f32 %v605, %v610
      %v613 = vmax.f32 %v612, 0.0
      %v614 = vld [vmem:[%s5] sm:$0xff]
      %v615 = vld [vmem:[%s5 + $0x8] sm:$0xff]
      %v616 = vld [vmem:[%s5 + $0x10] sm:$0xff]
      %v617 = vld [vmem:[%s5 + $0x18] sm:$0xff]
      %v618 = vld [vmem:[%s6] sm:$0xff]
      %v619 = vld [vmem:[%s6 + $0x8] sm:$0xff]
      %v620 = vld [vmem:[%s6 + $0x10] sm:$0xff]
      %v621 = vld [vmem:[%s6 + $0x18] sm:$0xff]
      %623 = vset.pattern.permute.xlu0 0
      %624 = vperm.xlu0 %623, %v618
      %v625 = vpop.permute.xlu0 %624
      %628 = vset.pattern.permute.xlu0 0
      %629 = vperm.xlu0 %628, %v619
      %v630 = vpop.permute.xlu0 %629
      %633 = vset.pattern.permute.xlu0 0
      %634 = vperm.xlu0 %633, %v620
      %v635 = vpop.permute.xlu0 %634
      %638 = vset.pattern.permute.xlu0 0
      %639 = vperm.xlu0 %638, %v621
      %v640 = vpop.permute.xlu0 %639
      %v643 = vsel %vm380, %v614, 0
      %v646 = vsel %vm380, %v615, 0
      %v649 = vsel %vm380, %v616, 0
      %v652 = vsel %vm380, %v617, 0
      %654 = vmatprep.subr.mxu0 0.0
      %655 = vmatpush1.msra.mxu0 0.0
      %656 = vmatprep.subr.mxu0 0.0
      %657 = vmatpush1.msra.mxu0 0.0
      %658 = vmatprep.subr.mxu0 0.0
      %659 = vmatpush1.msra.mxu0 0.0
      %660 = vmatprep.subr.mxu0 0.0
      %661 = vmatpush1.msra.mxu0 0.0
      %662 = vmatprep.subr.mxu0 0.0
      %663 = vmatpush1.msra.mxu0 0.0
      %664 = vmatprep.subr.mxu0 0.0
      %665 = vmatpush1.msra.mxu0 0.0
      %666 = vmatprep.subr.mxu0 0.0
      %667 = vmatpush1.msra.mxu0 0.0
      %668 = vmatprep.subr.mxu0 0.0
      %669 = vmatpush1.msra.mxu0 0.0
      %670 = vmatprep.subr.mxu0 0.0
      %671 = vmatpush1.msra.mxu0 0.0
      %672 = vmatprep.subr.mxu0 0.0
      %673 = vmatpush1.msra.mxu0 0.0
      %674 = vmatprep.subr.mxu0 0.0
      %675 = vmatpush1.msra.mxu0 0.0
      %676 = vmatprep.subr.mxu0 0.0
      %677 = vmatpush1.msra.mxu0 0.0
      %678 = vmatprep.subr.mxu0 0.0
      %679 = vmatpush1.msra.mxu0 0.0
      %680 = vmatprep.subr.mxu0 0.0
      %681 = vmatpush1.msra.mxu0 0.0
      %682 = vmatprep.subr.mxu0 0.0
      %683 = vmatpush1.msra.mxu0 0.0
      %684 = vmatprep.subr.mxu0 0.0
      %685 = vmatpush1.msra.mxu0 %v613
      %686 = vmatprep.subr.mxu0 0.0
      %687 = vmatpush2.msra.mxu0 0.0
      %688 = vmatprep.subr.mxu0 0.0
      %689 = vmatpush2.msra.mxu0 0.0
      %690 = vmatprep.subr.mxu0 0.0
      %691 = vmatpush2.msra.mxu0 0.0
      %692 = vmatprep.subr.mxu0 0.0
      %693 = vmatpush2.msra.mxu0 0.0
      %694 = vmatprep.subr.mxu0 0.0
      %695 = vmatpush2.msra.mxu0 0.0
      %696 = vmatprep.subr.mxu0 0.0
      %697 = vmatpush2.msra.mxu0 0.0
      %698 = vmatprep.subr.mxu0 0.0
      %699 = vmatpush2.msra.mxu0 0.0
      %700 = vmatprep.subr.mxu0 0.0
      %701 = vmatpush2.msra.mxu0 0.0
      %702 = vmatprep.subr.mxu0 0.0
      %703 = vmatpush2.msra.mxu0 0.0
      %704 = vmatprep.subr.mxu0 0.0
      %705 = vmatpush2.msra.mxu0 0.0
      %706 = vmatprep.subr.mxu0 0.0
      %707 = vmatpush2.msra.mxu0 0.0
      %708 = vmatprep.subr.mxu0 0.0
      %709 = vmatpush2.msra.mxu0 0.0
      %710 = vmatprep.subr.mxu0 0.0
      %711 = vmatpush2.msra.mxu0 0.0
      %712 = vmatprep.subr.mxu0 0.0
      %713 = vmatpush2.msra.mxu0 0.0
      %714 = vmatprep.subr.mxu0 0.0
      %715 = vmatpush2.msra.mxu0 0.0
      %716 = vmatprep.subr.mxu0 0.0
      %717 = vmatpush2.msra.mxu0 0.0
      %718 = vmatprep.mubr.f32.mxu0 0.0
      %719 = vmatmul.mubr.f32.gmra.mxu0 %v643
      %v720 = vpop.f32.mrf.mxu0
      %v721 = vadd.f32 %v625, %v720
      %v722 = vpop.f32.mrf.mxu0
      %723 = vmatprep.mubr.f32.mxu0 0.0
      %724 = vmatmul.mubr.f32.gmra.mxu0 %v646
      %v725 = vpop.f32.mrf.mxu0
      %v726 = vadd.f32 %v630, %v725
      %v727 = vpop.f32.mrf.mxu0
      %728 = vmatprep.mubr.f32.mxu0 0.0
      %729 = vmatmul.mubr.f32.gmra.mxu0 %v649
      %v730 = vpop.f32.mrf.mxu0
      %v731 = vadd.f32 %v635, %v730
      %v732 = vpop.f32.mrf.mxu0
      %733 = vmatprep.mubr.f32.mxu0 0.0
      %734 = vmatmul.mubr.f32.gmra.mxu0 %v652
      %v735 = vpop.f32.mrf.mxu0
      %v736 = vadd.f32 %v640, %v735
      %v737 = vpop.f32.mrf.mxu0
      %738 = vdwg.mxu0
      %v739 = vadd.f32 %v721, %v279
      %v740 = vadd.f32 %v726, %v280
      %v741 = vadd.f32 %v731, %v281
      %v742 = vadd.f32 %v736, %v282
      %v743 = vmax.f32 %v739, 0.0
      %v744 = vmax.f32 %v740, 0.0
      %v745 = vmax.f32 %v741, 0.0
      %v746 = vmax.f32 %v742, 0.0
      %vm747 = vcmask 130048
      %748 = vst.msk [vmem:[%s278] sm:$0xff] %vm747, %v743
      %749 = vst.msk [vmem:[%s278 + $0x8] sm:$0xff] %vm747, %v744
      %750 = vst.msk [vmem:[%s278 + $0x10] sm:$0xff] %vm747, %v745
      %751 = vst.msk [vmem:[%s278 + $0x18] sm:$0xff] %vm747, %v746
      %p752 = scmp.lt.s32.totalorder %s18, 3
      %s753 = scalar_select %p752, %s18, 3
      %s754 = smul.addr %s753, 4
      %s755 = smul.addr %s754, 8
      %s756 = scalar_lea.vmem %s7, %s755
      // Predicated region
      $region49: #{tpu_custom_call.1} parent=47 // pred_check
        %p757 = pneg %p188
      $region50: #{tpu_custom_call.1} parent=47 // pred_check_branch
        %759 = sbr.rel (%p757) target = $region52
      $region51: #{tpu_custom_call.1} parent=47 // pred_region
        _
      $region52: #{tpu_custom_call.1} parent=47 // pred_fallthru
        _
    $region48: #{tpu_custom_call.1} parent=5 // pred_fallthru
      _
    %p760 = scmp.le.s32.totalorder 2, %s13
    // Predicated region
    $region53: #{tpu_custom_call.1} parent=5 // pred_check
      %p761 = pneg %p760
    $region54: #{tpu_custom_call.1} parent=5 // pred_check_branch
      %763 = sbr.rel (%p761) target = $region56
    $region55: #{tpu_custom_call.1} parent=5 // pred_region
      %s764 = ssub.s32 %s13, 2
      // Predicated region
      $region57: #{tpu_custom_call.1} parent=55 // pred_check
        %p765 = pneg %p194
      $region58: #{tpu_custom_call.1} parent=55 // pred_check_branch
        %767 = sbr.rel (%p765) target = $region60
      $region59: #{tpu_custom_call.1} parent=55 // pred_region
        %p768 = scmp.lt.s32.totalorder %s19, 3
        %s769 = scalar_select %p768, %s19, 3
        %s770 = smul.addr %s769, 4
        %s771 = smul.addr %s770, 8
        %s772 = scalar_lea.vmem %s7, %s771
      $region60: #{tpu_custom_call.1} parent=55 // pred_fallthru
        _
    $region56: #{tpu_custom_call.1} parent=5 // pred_fallthru
      _
  $region6: #{tpu_custom_call.1} parent=0 // loop_footer
    %s17 = sadd.s32 1, %s13
  $region7: #{tpu_custom_call.1} parent=0 // loop_footer_branch
    %12 = sbr.rel target = $region3
  $region8: #{tpu_custom_call.1} parent=0 // loop_exit
    _

// kernel: tpu_custom_call.1
$region0: #{tpu_custom_call.1}
  #allocation0 [shape = 'u32[]', space=smem, size = 0x4, offset = 0x4, fixed_abs, tag = 'smem constant byte address 0x4 - core index']
  #allocation1 [shape = 'u32[144,128]{1,0:T(1,128)}', space=vmem, size = 0x12000, scoped, tag = 'internal scratch']
  %s0 = inlined_call_operand.vmem [shape: f32[4,32,16], index: 0, kind: input, shape index: {}]
  %s1 = inlined_call_operand.vmem [shape: f32[8,32], index: 1, kind: input, shape index: {}]
  %s2 = inlined_call_operand.vmem [shape: f32[8,1], index: 2, kind: input, shape index: {}]
  %s3 = inlined_call_operand.vmem [shape: f32[3,8,8], index: 3, kind: input, shape index: {}]
  %s4 = inlined_call_operand.vmem [shape: f32[8,1], index: 4, kind: input, shape index: {}]
  %s5 = inlined_call_operand.vmem [shape: f32[32,8], index: 5, kind: input, shape index: {}]
  %s6 = inlined_call_operand.vmem [shape: f32[32,1], index: 6, kind: input, shape index: {}]
  %s7 = inlined_call_operand.vmem [shape: f32[4,32,16], index: 7, kind: output, shape index: {}]
  %s8 = sld [smem:[#allocation0]]
  $region61: #{tpu_custom_call.1} parent=0
    _
  %s10 = ssub.s32 1, %s8
  %s11 = scalar_select 0, %s10, %s8
  loop: start=0, step=1, limit=6
  $region2: #{tpu_custom_call.1} parent=0 // loop_pre_header
    _
  $region3: #{tpu_custom_call.1} parent=0 // loop_header
    %s13 = sphi 0, %s17
    %p14 = scmp.ge.s32.totalorder %s13, 6
    %s23 = sphi 0, %s25
    %s26 = sphi 0, %s23
    %s27 = sphi 0, %s26
    %s43 = sphi 0, %s27
    %s47 = sphi 0, %s47
    %s49 = sphi 0, %s47
    %s50 = sphi 0, %s49
    %s64 = sphi 0, %s50
    %s68 = sphi 0, %s68
    %s70 = sphi 0, %s68
    %s71 = sphi 0, %s70
    %s85 = sphi 0, %s71
    %s89 = sphi 0, %s89
    %s91 = sphi 0, %s89
    %s92 = sphi 0, %s91
    %s106 = sphi 0, %s92
    %s110 = sphi 0, %s110
    %s112 = sphi 0, %s110
    %s113 = sphi 0, %s112
    %s127 = sphi 0, %s113
    %s131 = sphi 0, %s131
    %s133 = sphi 0, %s131
    %s134 = sphi 0, %s133
    %s148 = sphi 0, %s134
    %s152 = sphi 0, %s152
    %s154 = sphi 0, %s152
    %s155 = sphi 0, %s154
    %s169 = sphi 0, %s155
    %s175 = sphi 0, %s177
    %s178 = sphi 0, %s175
    %s179 = sphi 0, %s178
    %s195 = sphi 0, %s179
  $region4: #{tpu_custom_call.1} parent=0 // loop_header_branch
    %16 = sbr.rel (%p14) target = $region8
  $region5: #{tpu_custom_call.1} parent=0 // loop_body
    %s18 = ssub.s32 %s13, 1
    %s19 = ssub.s32 %s13, 2
    %s20 = sadd.s32 %s13, 1
    %s21 = ssub.s32 %s13, %s20
    %p22 = scmp.eq.s32.totalorder %s21, 0
    %s24 = sadd.s32 %s23, 1
    %s25 = scalar_select %p22, %s23, %s24
    %p28 = pneg %p22
    %p29 = scmp.eq.s32.totalorder %s13, 3
    %p30 = por %p28, %p29
    %p31 = scmp.ne.s32.totalorder %s23, %s26
    %p32 = scmp.eq.s32.totalorder %s13, 0
    %p33 = por %p31, %p32
    %p34 = scmp.ne.s32.totalorder %s23, %s26
    %p35 = scmp.eq.s32.totalorder %s18, 3
    %p36 = por %p34, %p35
    %p37 = scmp.ne.s32.totalorder %s26, %s27
    %p38 = scmp.eq.s32.totalorder %s18, 0
    %p39 = por %p37, %p38
    %p40 = scmp.ne.s32.totalorder %s26, %s27
    %p41 = scmp.eq.s32.totalorder %s19, 3
    %p42 = por %p40, %p41
    %p44 = scmp.ne.s32.totalorder %s27, %s43
    %p45 = scmp.eq.s32.totalorder %s19, 0
    %p46 = por %p44, %p45
    %s48 = sadd.s32 %s47, 1
    %p51 = scmp.eq.s32.totalorder %s13, 3
    %p52 = scmp.ne.s32.totalorder %s47, %s49
    %p53 = scmp.eq.s32.totalorder %s13, 0
    %p54 = por %p52, %p53
    %p55 = scmp.ne.s32.totalorder %s47, %s49
    %p56 = scmp.eq.s32.totalorder %s18, 3
    %p57 = por %p55, %p56
    %p58 = scmp.ne.s32.totalorder %s49, %s50
    %p59 = scmp.eq.s32.totalorder %s18, 0
    %p60 = por %p58, %p59
    %p61 = scmp.ne.s32.totalorder %s49, %s50
    %p62 = scmp.eq.s32.totalorder %s19, 3
    %p63 = por %p61, %p62
    %p65 = scmp.ne.s32.totalorder %s50, %s64
    %p66 = scmp.eq.s32.totalorder %s19, 0
    %p67 = por %p65, %p66
    %s69 = sadd.s32 %s68, 1
    %p72 = scmp.eq.s32.totalorder %s13, 3
    %p73 = scmp.ne.s32.totalorder %s68, %s70
    %p74 = scmp.eq.s32.totalorder %s13, 0
    %p75 = por %p73, %p74
    %p76 = scmp.ne.s32.totalorder %s68, %s70
    %p77 = scmp.eq.s32.totalorder %s18, 3
    %p78 = por %p76, %p77
    %p79 = scmp.ne.s32.totalorder %s70, %s71
    %p80 = scmp.eq.s32.totalorder %s18, 0
    %p81 = por %p79, %p80
    %p82 = scmp.ne.s32.totalorder %s70, %s71
    %p83 = scmp.eq.s32.totalorder %s19, 3
    %p84 = por %p82, %p83
    %p86 = scmp.ne.s32.totalorder %s71, %s85
    %p87 = scmp.eq.s32.totalorder %s19, 0
    %p88 = por %p86, %p87
    %s90 = sadd.s32 %s89, 1
    %p93 = scmp.eq.s32.totalorder %s13, 3
    %p94 = scmp.ne.s32.totalorder %s89, %s91
    %p95 = scmp.eq.s32.totalorder %s13, 0
    %p96 = por %p94, %p95
    %p97 = scmp.ne.s32.totalorder %s89, %s91
    %p98 = scmp.eq.s32.totalorder %s18, 3
    %p99 = por %p97, %p98
    %p100 = scmp.ne.s32.totalorder %s91, %s92
    %p101 = scmp.eq.s32.totalorder %s18, 0
    %p102 = por %p100, %p101
    %p103 = scmp.ne.s32.totalorder %s91, %s92
    %p104 = scmp.eq.s32.totalorder %s19, 3
    %p105 = por %p103, %p104
    %p107 = scmp.ne.s32.totalorder %s92, %s106
    %p108 = scmp.eq.s32.totalorder %s19, 0
    %p109 = por %p107, %p108
    %s111 = sadd.s32 %s110, 1
    %p114 = scmp.eq.s32.totalorder %s13, 3
    %p115 = scmp.ne.s32.totalorder %s110, %s112
    %p116 = scmp.eq.s32.totalorder %s13, 0
    %p117 = por %p115, %p116
    %p118 = scmp.ne.s32.totalorder %s110, %s112
    %p119 = scmp.eq.s32.totalorder %s18, 3
    %p120 = por %p118, %p119
    %p121 = scmp.ne.s32.totalorder %s112, %s113
    %p122 = scmp.eq.s32.totalorder %s18, 0
    %p123 = por %p121, %p122
    %p124 = scmp.ne.s32.totalorder %s112, %s113
    %p125 = scmp.eq.s32.totalorder %s19, 3
    %p126 = por %p124, %p125
    %p128 = scmp.ne.s32.totalorder %s113, %s127
    %p129 = scmp.eq.s32.totalorder %s19, 0
    %p130 = por %p128, %p129
    %s132 = sadd.s32 %s131, 1
    %p135 = scmp.eq.s32.totalorder %s13, 3
    %p136 = scmp.ne.s32.totalorder %s131, %s133
    %p137 = scmp.eq.s32.totalorder %s13, 0
    %p138 = por %p136, %p137
    %p139 = scmp.ne.s32.totalorder %s131, %s133
    %p140 = scmp.eq.s32.totalorder %s18, 3
    %p141 = por %p139, %p140
    %p142 = scmp.ne.s32.totalorder %s133, %s134
    %p143 = scmp.eq.s32.totalorder %s18, 0
    %p144 = por %p142, %p143
    %p145 = scmp.ne.s32.totalorder %s133, %s134
    %p146 = scmp.eq.s32.totalorder %s19, 3
    %p147 = por %p145, %p146
    %p149 = scmp.ne.s32.totalorder %s134, %s148
    %p150 = scmp.eq.s32.totalorder %s19, 0
    %p151 = por %p149, %p150
    %s153 = sadd.s32 %s152, 1
    %p156 = scmp.eq.s32.totalorder %s13, 3
    %p157 = scmp.ne.s32.totalorder %s152, %s154
    %p158 = scmp.eq.s32.totalorder %s13, 0
    %p159 = por %p157, %p158
    %p160 = scmp.ne.s32.totalorder %s152, %s154
    %p161 = scmp.eq.s32.totalorder %s18, 3
    %p162 = por %p160, %p161
    %p163 = scmp.ne.s32.totalorder %s154, %s155
    %p164 = scmp.eq.s32.totalorder %s18, 0
    %p165 = por %p163, %p164
    %p166 = scmp.ne.s32.totalorder %s154, %s155
    %p167 = scmp.eq.s32.totalorder %s19, 3
    %p168 = por %p166, %p167
    %p170 = scmp.ne.s32.totalorder %s155, %s169
    %p171 = scmp.eq.s32.totalorder %s19, 0
    %p172 = por %p170, %p171
    %s173 = ssub.s32 %s13, %s20
    %p174 = scmp.eq.s32.totalorder %s173, 0
    %s176 = sadd.s32 %s175, 1
    %s177 = scalar_select %p174, %s175, %s176
    %p180 = pneg %p174
    %p181 = scmp.eq.s32.totalorder %s13, 3
    %p182 = por %p180, %p181
    %p183 = scmp.ne.s32.totalorder %s175, %s178
    %p184 = scmp.eq.s32.totalorder %s13, 0
    %p185 = por %p183, %p184
    %p186 = scmp.ne.s32.totalorder %s175, %s178
    %p187 = scmp.eq.s32.totalorder %s18, 3
    %p188 = por %p186, %p187
    %p189 = scmp.ne.s32.totalorder %s178, %s179
    %p190 = scmp.eq.s32.totalorder %s18, 0
    %p191 = por %p189, %p190
    %p192 = scmp.ne.s32.totalorder %s178, %s179
    %p193 = scmp.eq.s32.totalorder %s19, 3
    %p194 = por %p192, %p193
    %p196 = scmp.ne.s32.totalorder %s179, %s195
    %p197 = scmp.eq.s32.totalorder %s19, 0
    %p198 = por %p196, %p197
    %p199 = scmp.le.s32.totalorder 1, %s13
    %p200 = scmp.lt.s32.totalorder %s13, 5
    %p201 = pnand %p199, %p200
    %p202 = pneg %p201
    // Predicated region
    $region9: #{tpu_custom_call.1} parent=5 // pred_check
      _
    $region10: #{tpu_custom_call.1} parent=5 // pred_check_branch
      %204 = sbr.rel (%p201) target = $region12
    $region11: #{tpu_custom_call.1} parent=5 // pred_region
      %s205 = ssub.s32 %s13, 1
      // Predicated region
      $region13: #{tpu_custom_call.1} parent=11 // pred_check
        %p206 = pneg %p60
      $region14: #{tpu_custom_call.1} parent=11 // pred_check_branch
        %208 = sbr.rel (%p206) target = $region16
      $region15: #{tpu_custom_call.1} parent=11 // pred_region
        _
      $region16: #{tpu_custom_call.1} parent=11 // pred_fallthru
        _
      // Predicated region
      $region17: #{tpu_custom_call.1} parent=11 // pred_check
        %p209 = pneg %p81
      $region18: #{tpu_custom_call.1} parent=11 // pred_check_branch
        %211 = sbr.rel (%p209) target = $region20
      $region19: #{tpu_custom_call.1} parent=11 // pred_region
        _
      $region20: #{tpu_custom_call.1} parent=11 // pred_fallthru
        _
      // Predicated region
      $region21: #{tpu_custom_call.1} parent=11 // pred_check
        %p212 = pneg %p102
      $region22: #{tpu_custom_call.1} parent=11 // pred_check_branch
        %214 = sbr.rel (%p212) target = $region24
      $region23: #{tpu_custom_call.1} parent=11 // pred_region
        _
      $region24: #{tpu_custom_call.1} parent=11 // pred_fallthru
        _
      // Predicated region
      $region25: #{tpu_custom_call.1} parent=11 // pred_check
        %p215 = pneg %p123
      $region26: #{tpu_custom_call.1} parent=11 // pred_check_branch
        %217 = sbr.rel (%p215) target = $region28
      $region27: #{tpu_custom_call.1} parent=11 // pred_region
        _
      $region28: #{tpu_custom_call.1} parent=11 // pred_fallthru
        _
      // Predicated region
      $region29: #{tpu_custom_call.1} parent=11 // pred_check
        %p218 = pneg %p144
      $region30: #{tpu_custom_call.1} parent=11 // pred_check_branch
        %220 = sbr.rel (%p218) target = $region32
      $region31: #{tpu_custom_call.1} parent=11 // pred_region
        _
      $region32: #{tpu_custom_call.1} parent=11 // pred_fallthru
        _
      // Predicated region
      $region33: #{tpu_custom_call.1} parent=11 // pred_check
        %p221 = pneg %p165
      $region34: #{tpu_custom_call.1} parent=11 // pred_check_branch
        %223 = sbr.rel (%p221) target = $region36
      $region35: #{tpu_custom_call.1} parent=11 // pred_region
        _
      $region36: #{tpu_custom_call.1} parent=11 // pred_fallthru
        _
    $region12: #{tpu_custom_call.1} parent=5 // pred_fallthru
      _
    %p224 = scmp.lt.s32.totalorder %s13, 4
    // Predicated region
    $region37: #{tpu_custom_call.1} parent=5 // pred_check
      %p225 = pneg %p224
    $region38: #{tpu_custom_call.1} parent=5 // pred_check_branch
      %227 = sbr.rel (%p225) target = $region40
    $region39: #{tpu_custom_call.1} parent=5 // pred_region
      // Predicated region
      $region41: #{tpu_custom_call.1} parent=39 // pred_check
        %p228 = pneg %p33
      $region42: #{tpu_custom_call.1} parent=39 // pred_check_branch
        %230 = sbr.rel (%p228) target = $region44
      $region43: #{tpu_custom_call.1} parent=39 // pred_region
        %p231 = scmp.lt.s32.totalorder %s13, 3
        %s232 = scalar_select %p231, %s13, 3
        %s233 = smul.addr %s232, 4
        %s234 = smul.addr %s233, 8
        %s235 = scalar_lea.vmem %s0, %s234
      $region44: #{tpu_custom_call.1} parent=39 // pred_fallthru
        _
    $region40: #{tpu_custom_call.1} parent=5 // pred_fallthru
      _
    %p236 = scmp.le.s32.totalorder 1, %s13
    %p237 = scmp.lt.s32.totalorder %s13, 5
    %p238 = pnand %p236, %p237
    %p239 = pneg %p238
    // Predicated region
    $region45: #{tpu_custom_call.1} parent=5 // pred_check
      _
    $region46: #{tpu_custom_call.1} parent=5 // pred_check_branch
      %241 = sbr.rel (%p238) target = $region48
    $region47: #{tpu_custom_call.1} parent=5 // pred_region
      %s242 = ssub.s32 %s13, 1
      %p243 = scmp.lt.s32.totalorder %s18, 3
      %s244 = scalar_select %p243, %s18, 3
      %s245 = smul.addr %s244, 4
      %s246 = smul.addr %s245, 8
      %s247 = scalar_lea.vmem %s0, %s246
      %p248 = pneg %p39
      %p249 = pneg %p36
      %p250 = pneg %p60
      %p251 = pneg %p57
      %p252 = pneg %p81
      %p253 = pneg %p78
      %p254 = pneg %p102
      %p255 = pneg %p99
      %p256 = pneg %p123
      %p257 = pneg %p120
      %p258 = pneg %p144
      %p259 = pneg %p141
      %p260 = pneg %p165
      %p261 = pneg %p162
      %p262 = pneg %p191
      %p263 = pneg %p188
      %p264 = scmp.lt.s32.totalorder %s18, 3
      %s265 = scalar_select %p264, %s18, 3
      %s266 = smul.addr %s265, 4
      %s267 = smul.addr %s266, 8
      %s268 = scalar_lea.vmem %s7, %s267
      %p269 = scmp.lt.s32.totalorder %s18, 3
      %s270 = scalar_select %p269, %s18, 3
      %s271 = smul.addr %s270, 4
      %s272 = smul.addr %s271, 8
      %s273 = scalar_lea.vmem %s0, %s272
      %p274 = scmp.lt.s32.totalorder %s18, 3
      %s275 = scalar_select %p274, %s18, 3
      %s276 = smul.addr %s275, 4
      %s277 = smul.addr %s276, 8
      %s278 = scalar_lea.vmem %s7, %s277
      %v279 = vld [vmem:[%s273] sm:$0xff]
      %v280 = vld [vmem:[%s273 + $0x8] sm:$0xff]
      %v281 = vld [vmem:[%s273 + $0x10] sm:$0xff]
      %v282 = vld [vmem:[%s273 + $0x18] sm:$0xff]
      %v283 = vld [vmem:[%s1] sm:$0xff]
      %v284 = vld [vmem:[%s2] sm:$0xff]
      %286 = vset.pattern.permute.xlu0 0
      %287 = vperm.xlu0 %286, %v284
      %v288 = vpop.permute.xlu0 %287
      %vm290 = vcmask 261120
      %v292 = vsel %vm290, %v283, 0
      %294 = vmatprep.subr.mxu0 0.0
      %295 = vmatpush1.msra.mxu0 0.0
      %296 = vmatprep.subr.mxu0 0.0
      %297 = vmatpush1.msra.mxu0 0.0
      %298 = vmatprep.subr.mxu0 0.0
      %299 = vmatpush1.msra.mxu0 0.0
      %300 = vmatprep.subr.mxu0 0.0
      %301 = vmatpush1.msra.mxu0 0.0
      %302 = vmatprep.subr.mxu0 0.0
      %303 = vmatpush1.msra.mxu0 0.0
      %304 = vmatprep.subr.mxu0 0.0
      %305 = vmatpush1.msra.mxu0 0.0
      %306 = vmatprep.subr.mxu0 0.0
      %307 = vmatpush1.msra.mxu0 0.0
      %308 = vmatprep.subr.mxu0 0.0
      %309 = vmatpush1.msra.mxu0 0.0
      %310 = vmatprep.subr.mxu0 0.0
      %311 = vmatpush1.msra.mxu0 0.0
      %312 = vmatprep.subr.mxu0 0.0
      %313 = vmatpush1.msra.mxu0 0.0
      %314 = vmatprep.subr.mxu0 0.0
      %315 = vmatpush1.msra.mxu0 0.0
      %316 = vmatprep.subr.mxu0 0.0
      %317 = vmatpush1.msra.mxu0 0.0
      %318 = vmatprep.subr.mxu0 0.0
      %319 = vmatpush1.msra.mxu0 %v282
      %320 = vmatprep.subr.mxu0 0.0
      %321 = vmatpush1.msra.mxu0 %v281
      %322 = vmatprep.subr.mxu0 0.0
      %323 = vmatpush1.msra.mxu0 %v280
      %324 = vmatprep.subr.mxu0 0.0
      %325 = vmatpush1.msra.mxu0 %v279
      %326 = vmatprep.subr.mxu0 0.0
      %327 = vmatpush2.msra.mxu0 0.0
      %328 = vmatprep.subr.mxu0 0.0
      %329 = vmatpush2.msra.mxu0 0.0
      %330 = vmatprep.subr.mxu0 0.0
      %331 = vmatpush2.msra.mxu0 0.0
      %332 = vmatprep.subr.mxu0 0.0
      %333 = vmatpush2.msra.mxu0 0.0
      %334 = vmatprep.subr.mxu0 0.0
      %335 = vmatpush2.msra.mxu0 0.0
      %336 = vmatprep.subr.mxu0 0.0
      %337 = vmatpush2.msra.mxu0 0.0
      %338 = vmatprep.subr.mxu0 0.0
      %339 = vmatpush2.msra.mxu0 0.0
      %340 = vmatprep.subr.mxu0 0.0
      %341 = vmatpush2.msra.mxu0 0.0
      %342 = vmatprep.subr.mxu0 0.0
      %343 = vmatpush2.msra.mxu0 0.0
      %344 = vmatprep.subr.mxu0 0.0
      %345 = vmatpush2.msra.mxu0 0.0
      %346 = vmatprep.subr.mxu0 0.0
      %347 = vmatpush2.msra.mxu0 0.0
      %348 = vmatprep.subr.mxu0 0.0
      %349 = vmatpush2.msra.mxu0 0.0
      %350 = vmatprep.subr.mxu0 0.0
      %351 = vmatpush2.msra.mxu0 0.0
      %352 = vmatprep.subr.mxu0 0.0
      %353 = vmatpush2.msra.mxu0 0.0
      %354 = vmatprep.subr.mxu0 0.0
      %355 = vmatpush2.msra.mxu0 0.0
      %356 = vmatprep.subr.mxu0 0.0
      %357 = vmatpush2.msra.mxu0 0.0
      %358 = vmatprep.mubr.f32.mxu0 0.0
      %359 = vmatmul.mubr.f32.gmra.mxu0 %v292
      %v360 = vpop.f32.mrf.mxu0
      %v361 = vadd.f32 %v288, %v360
      %v362 = vpop.f32.mrf.mxu0
      %363 = vdwg.mxu0
      %v364 = vmax.f32 %v361, 0.0
      %366 = vrot.lane.b32.xlu0 %v364, 1
      %v367 = vpop.permute.xlu0 %366
      %vm369 = vcmask 7168
      %v370 = vsel %vm369, 0.0, %v367
      %vm371 = vcmask 138240
      %v372 = vsel %vm371, %v370, 0.0
      %v373 = vld [vmem:[%s3] sm:$0xff]
      %s374 = scalar_lea.vmem %s3, 8
      %v375 = vld [vmem:[%s374] sm:$0xff]
      %377 = vrot.lane.b32.xlu0 %v372, 127
      %v378 = vpop.permute.xlu0 %377
      %vm380 = vcmask 64512
      %v382 = vsel %vm380, %v375, 0
      %384 = vmatprep.subr.mxu0 0.0
      %385 = vmatpush1.msra.mxu0 0.0
      %386 = vmatprep.subr.mxu0 0.0
      %387 = vmatpush1.msra.mxu0 0.0
      %388 = vmatprep.subr.mxu0 0.0
      %389 = vmatpush1.msra.mxu0 0.0
      %390 = vmatprep.subr.mxu0 0.0
      %391 = vmatpush1.msra.mxu0 0.0
      %392 = vmatprep.subr.mxu0 0.0
      %393 = vmatpush1.msra.mxu0 0.0
      %394 = vmatprep.subr.mxu0 0.0
      %395 = vmatpush1.msra.mxu0 0.0
      %396 = vmatprep.subr.mxu0 0.0
      %397 = vmatpush1.msra.mxu0 0.0
      %398 = vmatprep.subr.mxu0 0.0
      %399 = vmatpush1.msra.mxu0 0.0
      %400 = vmatprep.subr.mxu0 0.0
      %401 = vmatpush1.msra.mxu0 0.0
      %402 = vmatprep.subr.mxu0 0.0
      %403 = vmatpush1.msra.mxu0 0.0
      %404 = vmatprep.subr.mxu0 0.0
      %405 = vmatpush1.msra.mxu0 0.0
      %406 = vmatprep.subr.mxu0 0.0
      %407 = vmatpush1.msra.mxu0 0.0
      %408 = vmatprep.subr.mxu0 0.0
      %409 = vmatpush1.msra.mxu0 0.0
      %410 = vmatprep.subr.mxu0 0.0
      %411 = vmatpush1.msra.mxu0 0.0
      %412 = vmatprep.subr.mxu0 0.0
      %413 = vmatpush1.msra.mxu0 0.0
      %414 = vmatprep.subr.mxu0 0.0
      %415 = vmatpush1.msra.mxu0 %v378
      %416 = vmatprep.subr.mxu0 0.0
      %417 = vmatpush2.msra.mxu0 0.0
      %418 = vmatprep.subr.mxu0 0.0
      %419 = vmatpush2.msra.mxu0 0.0
      %420 = vmatprep.subr.mxu0 0.0
      %421 = vmatpush2.msra.mxu0 0.0
      %422 = vmatprep.subr.mxu0 0.0
      %423 = vmatpush2.msra.mxu0 0.0
      %424 = vmatprep.subr.mxu0 0.0
      %425 = vmatpush2.msra.mxu0 0.0
      %426 = vmatprep.subr.mxu0 0.0
      %427 = vmatpush2.msra.mxu0 0.0
      %428 = vmatprep.subr.mxu0 0.0
      %429 = vmatpush2.msra.mxu0 0.0
      %430 = vmatprep.subr.mxu0 0.0
      %431 = vmatpush2.msra.mxu0 0.0
      %432 = vmatprep.subr.mxu0 0.0
      %433 = vmatpush2.msra.mxu0 0.0
      %434 = vmatprep.subr.mxu0 0.0
      %435 = vmatpush2.msra.mxu0 0.0
      %436 = vmatprep.subr.mxu0 0.0
      %437 = vmatpush2.msra.mxu0 0.0
      %438 = vmatprep.subr.mxu0 0.0
      %439 = vmatpush2.msra.mxu0 0.0
      %440 = vmatprep.subr.mxu0 0.0
      %441 = vmatpush2.msra.mxu0 0.0
      %442 = vmatprep.subr.mxu0 0.0
      %443 = vmatpush2.msra.mxu0 0.0
      %444 = vmatprep.subr.mxu0 0.0
      %445 = vmatpush2.msra.mxu0 0.0
      %446 = vmatprep.subr.mxu0 0.0
      %447 = vmatpush2.msra.mxu0 0.0
      %448 = vmatprep.mubr.f32.mxu0 0.0
      %449 = vmatmul.mubr.f32.gmra.mxu0 %v382
      %v450 = vpop.f32.mrf.mxu0
      %v451 = vadd.f32 0.0, %v450
      %v452 = vpop.f32.mrf.mxu0
      %453 = vdwg.mxu0
      %v455 = vsel %vm380, %v373, 0
      %457 = vmatprep.subr.mxu0 0.0
      %458 = vmatpush1.msra.mxu0 0.0
      %459 = vmatprep.subr.mxu0 0.0
      %460 = vmatpush1.msra.mxu0 0.0
      %461 = vmatprep.subr.mxu0 0.0
      %462 = vmatpush1.msra.mxu0 0.0
      %463 = vmatprep.subr.mxu0 0.0
      %464 = vmatpush1.msra.mxu0 0.0
      %465 = vmatprep.subr.mxu0 0.0
      %466 = vmatpush1.msra.mxu0 0.0
      %467 = vmatprep.subr.mxu0 0.0
      %468 = vmatpush1.msra.mxu0 0.0
      %469 = vmatprep.subr.mxu0 0.0
      %470 = vmatpush1.msra.mxu0 0.0
      %471 = vmatprep.subr.mxu0 0.0
      %472 = vmatpush1.msra.mxu0 0.0
      %473 = vmatprep.subr.mxu0 0.0
      %474 = vmatpush1.msra.mxu0 0.0
      %475 = vmatprep.subr.mxu0 0.0
      %476 = vmatpush1.msra.mxu0 0.0
      %477 = vmatprep.subr.mxu0 0.0
      %478 = vmatpush1.msra.mxu0 0.0
      %479 = vmatprep.subr.mxu0 0.0
      %480 = vmatpush1.msra.mxu0 0.0
      %481 = vmatprep.subr.mxu0 0.0
      %482 = vmatpush1.msra.mxu0 0.0
      %483 = vmatprep.subr.mxu0 0.0
      %484 = vmatpush1.msra.mxu0 0.0
      %485 = vmatprep.subr.mxu0 0.0
      %486 = vmatpush1.msra.mxu0 0.0
      %487 = vmatprep.subr.mxu0 0.0
      %488 = vmatpush1.msra.mxu0 %v372
      %489 = vmatprep.subr.mxu0 0.0
      %490 = vmatpush2.msra.mxu0 0.0
      %491 = vmatprep.subr.mxu0 0.0
      %492 = vmatpush2.msra.mxu0 0.0
      %493 = vmatprep.subr.mxu0 0.0
      %494 = vmatpush2.msra.mxu0 0.0
      %495 = vmatprep.subr.mxu0 0.0
      %496 = vmatpush2.msra.mxu0 0.0
      %497 = vmatprep.subr.mxu0 0.0
      %498 = vmatpush2.msra.mxu0 0.0
      %499 = vmatprep.subr.mxu0 0.0
      %500 = vmatpush2.msra.mxu0 0.0
      %501 = vmatprep.subr.mxu0 0.0
      %502 = vmatpush2.msra.mxu0 0.0
      %503 = vmatprep.subr.mxu0 0.0
      %504 = vmatpush2.msra.mxu0 0.0
      %505 = vmatprep.subr.mxu0 0.0
      %506 = vmatpush2.msra.mxu0 0.0
      %507 = vmatprep.subr.mxu0 0.0
      %508 = vmatpush2.msra.mxu0 0.0
      %509 = vmatprep.subr.mxu0 0.0
      %510 = vmatpush2.msra.mxu0 0.0
      %511 = vmatprep.subr.mxu0 0.0
      %512 = vmatpush2.msra.mxu0 0.0
      %513 = vmatprep.subr.mxu0 0.0
      %514 = vmatpush2.msra.mxu0 0.0
      %515 = vmatprep.subr.mxu0 0.0
      %516 = vmatpush2.msra.mxu0 0.0
      %517 = vmatprep.subr.mxu0 0.0
      %518 = vmatpush2.msra.mxu0 0.0
      %519 = vmatprep.subr.mxu0 0.0
      %520 = vmatpush2.msra.mxu0 0.0
      %521 = vmatprep.mubr.f32.mxu0 0.0
      %522 = vmatmul.mubr.f32.gmra.mxu0 %v455
      %v523 = vpop.f32.mrf.mxu0
      %v524 = vadd.f32 %v451, %v523
      %v525 = vpop.f32.mrf.mxu0
      %526 = vdwg.mxu0
      %s527 = scalar_lea.vmem %s3, 16
      %v528 = vld [vmem:[%s527] sm:$0xff]
      %529 = vrot.lane.b32.xlu0 %v372, 126
      %v530 = vpop.permute.xlu0 %529
      %v533 = vsel %vm380, %v528, 0
      %535 = vmatprep.subr.mxu0 0.0
      %536 = vmatpush1.msra.mxu0 0.0
      %537 = vmatprep.subr.mxu0 0.0
      %538 = vmatpush1.msra.mxu0 0.0
      %539 = vmatprep.subr.mxu0 0.0
      %540 = vmatpush1.msra.mxu0 0.0
      %541 = vmatprep.subr.mxu0 0.0
      %542 = vmatpush1.msra.mxu0 0.0
      %543 = vmatprep.subr.mxu0 0.0
      %544 = vmatpush1.msra.mxu0 0.0
      %545 = vmatprep.subr.mxu0 0.0
      %546 = vmatpush1.msra.mxu0 0.0
      %547 = vmatprep.subr.mxu0 0.0
      %548 = vmatpush1.msra.mxu0 0.0
      %549 = vmatprep.subr.mxu0 0.0
      %550 = vmatpush1.msra.mxu0 0.0
      %551 = vmatprep.subr.mxu0 0.0
      %552 = vmatpush1.msra.mxu0 0.0
      %553 = vmatprep.subr.mxu0 0.0
      %554 = vmatpush1.msra.mxu0 0.0
      %555 = vmatprep.subr.mxu0 0.0
      %556 = vmatpush1.msra.mxu0 0.0
      %557 = vmatprep.subr.mxu0 0.0
      %558 = vmatpush1.msra.mxu0 0.0
      %559 = vmatprep.subr.mxu0 0.0
      %560 = vmatpush1.msra.mxu0 0.0
      %561 = vmatprep.subr.mxu0 0.0
      %562 = vmatpush1.msra.mxu0 0.0
      %563 = vmatprep.subr.mxu0 0.0
      %564 = vmatpush1.msra.mxu0 0.0
      %565 = vmatprep.subr.mxu0 0.0
      %566 = vmatpush1.msra.mxu0 %v530
      %567 = vmatprep.subr.mxu0 0.0
      %568 = vmatpush2.msra.mxu0 0.0
      %569 = vmatprep.subr.mxu0 0.0
      %570 = vmatpush2.msra.mxu0 0.0
      %571 = vmatprep.subr.mxu0 0.0
      %572 = vmatpush2.msra.mxu0 0.0
      %573 = vmatprep.subr.mxu0 0.0
      %574 = vmatpush2.msra.mxu0 0.0
      %575 = vmatprep.subr.mxu0 0.0
      %576 = vmatpush2.msra.mxu0 0.0
      %577 = vmatprep.subr.mxu0 0.0
      %578 = vmatpush2.msra.mxu0 0.0
      %579 = vmatprep.subr.mxu0 0.0
      %580 = vmatpush2.msra.mxu0 0.0
      %581 = vmatprep.subr.mxu0 0.0
      %582 = vmatpush2.msra.mxu0 0.0
      %583 = vmatprep.subr.mxu0 0.0
      %584 = vmatpush2.msra.mxu0 0.0
      %585 = vmatprep.subr.mxu0 0.0
      %586 = vmatpush2.msra.mxu0 0.0
      %587 = vmatprep.subr.mxu0 0.0
      %588 = vmatpush2.msra.mxu0 0.0
      %589 = vmatprep.subr.mxu0 0.0
      %590 = vmatpush2.msra.mxu0 0.0
      %591 = vmatprep.subr.mxu0 0.0
      %592 = vmatpush2.msra.mxu0 0.0
      %593 = vmatprep.subr.mxu0 0.0
      %594 = vmatpush2.msra.mxu0 0.0
      %595 = vmatprep.subr.mxu0 0.0
      %596 = vmatpush2.msra.mxu0 0.0
      %597 = vmatprep.subr.mxu0 0.0
      %598 = vmatpush2.msra.mxu0 0.0
      %599 = vmatprep.mubr.f32.mxu0 0.0
      %600 = vmatmul.mubr.f32.gmra.mxu0 %v533
      %v601 = vpop.f32.mrf.mxu0
      %v602 = vadd.f32 0.0, %v601
      %v603 = vpop.f32.mrf.mxu0
      %604 = vdwg.mxu0
      %v605 = vadd.f32 %v524, %v602
      %v606 = vld [vmem:[%s4] sm:$0xff]
      %608 = vset.pattern.permute.xlu0 0
      %609 = vperm.xlu0 %608, %v606
      %v610 = vpop.permute.xlu0 %609
      %v612 = vadd.f32 %v605, %v610
      %v613 = vmax.f32 %v612, 0.0
      %v614 = vld [vmem:[%s5] sm:$0xff]
      %v615 = vld [vmem:[%s5 + $0x8] sm:$0xff]
      %v616 = vld [vmem:[%s5 + $0x10] sm:$0xff]
      %v617 = vld [vmem:[%s5 + $0x18] sm:$0xff]
      %v618 = vld [vmem:[%s6] sm:$0xff]
      %v619 = vld [vmem:[%s6 + $0x8] sm:$0xff]
      %v620 = vld [vmem:[%s6 + $0x10] sm:$0xff]
      %v621 = vld [vmem:[%s6 + $0x18] sm:$0xff]
      %623 = vset.pattern.permute.xlu0 0
      %624 = vperm.xlu0 %623, %v618
      %v625 = vpop.permute.xlu0 %624
      %628 = vset.pattern.permute.xlu0 0
      %629 = vperm.xlu0 %628, %v619
      %v630 = vpop.permute.xlu0 %629
      %633 = vset.pattern.permute.xlu0 0
      %634 = vperm.xlu0 %633, %v620
      %v635 = vpop.permute.xlu0 %634
      %638 = vset.pattern.permute.xlu0 0
      %639 = vperm.xlu0 %638, %v621
      %v640 = vpop.permute.xlu0 %639
      %v643 = vsel %vm380, %v614, 0
      %v646 = vsel %vm380, %v615, 0
      %v649 = vsel %vm380, %v616, 0
      %v652 = vsel %vm380, %v617, 0
      %654 = vmatprep.subr.mxu0 0.0
      %655 = vmatpush1.msra.mxu0 0.0
      %656 = vmatprep.subr.mxu0 0.0
      %657 = vmatpush1.msra.mxu0 0.0
      %658 = vmatprep.subr.mxu0 0.0
      %659 = vmatpush1.msra.mxu0 0.0
      %660 = vmatprep.subr.mxu0 0.0
      %661 = vmatpush1.msra.mxu0 0.0
      %662 = vmatprep.subr.mxu0 0.0
      %663 = vmatpush1.msra.mxu0 0.0
      %664 = vmatprep.subr.mxu0 0.0
      %665 = vmatpush1.msra.mxu0 0.0
      %666 = vmatprep.subr.mxu0 0.0
      %667 = vmatpush1.msra.mxu0 0.0
      %668 = vmatprep.subr.mxu0 0.0
      %669 = vmatpush1.msra.mxu0 0.0
      %670 = vmatprep.subr.mxu0 0.0
      %671 = vmatpush1.msra.mxu0 0.0
      %672 = vmatprep.subr.mxu0 0.0
      %673 = vmatpush1.msra.mxu0 0.0
      %674 = vmatprep.subr.mxu0 0.0
      %675 = vmatpush1.msra.mxu0 0.0
      %676 = vmatprep.subr.mxu0 0.0
      %677 = vmatpush1.msra.mxu0 0.0
      %678 = vmatprep.subr.mxu0 0.0
      %679 = vmatpush1.msra.mxu0 0.0
      %680 = vmatprep.subr.mxu0 0.0
      %681 = vmatpush1.msra.mxu0 0.0
      %682 = vmatprep.subr.mxu0 0.0
      %683 = vmatpush1.msra.mxu0 0.0
      %684 = vmatprep.subr.mxu0 0.0
      %685 = vmatpush1.msra.mxu0 %v613
      %686 = vmatprep.subr.mxu0 0.0
      %687 = vmatpush2.msra.mxu0 0.0
      %688 = vmatprep.subr.mxu0 0.0
      %689 = vmatpush2.msra.mxu0 0.0
      %690 = vmatprep.subr.mxu0 0.0
      %691 = vmatpush2.msra.mxu0 0.0
      %692 = vmatprep.subr.mxu0 0.0
      %693 = vmatpush2.msra.mxu0 0.0
      %694 = vmatprep.subr.mxu0 0.0
      %695 = vmatpush2.msra.mxu0 0.0
      %696 = vmatprep.subr.mxu0 0.0
      %697 = vmatpush2.msra.mxu0 0.0
      %698 = vmatprep.subr.mxu0 0.0
      %699 = vmatpush2.msra.mxu0 0.0
      %700 = vmatprep.subr.mxu0 0.0
      %701 = vmatpush2.msra.mxu0 0.0
      %702 = vmatprep.subr.mxu0 0.0
      %703 = vmatpush2.msra.mxu0 0.0
      %704 = vmatprep.subr.mxu0 0.0
      %705 = vmatpush2.msra.mxu0 0.0
      %706 = vmatprep.subr.mxu0 0.0
      %707 = vmatpush2.msra.mxu0 0.0
      %708 = vmatprep.subr.mxu0 0.0
      %709 = vmatpush2.msra.mxu0 0.0
      %710 = vmatprep.subr.mxu0 0.0
      %711 = vmatpush2.msra.mxu0 0.0
      %712 = vmatprep.subr.mxu0 0.0
      %713 = vmatpush2.msra.mxu0 0.0
      %714 = vmatprep.subr.mxu0 0.0
      %715 = vmatpush2.msra.mxu0 0.0
      %716 = vmatprep.subr.mxu0 0.0
      %717 = vmatpush2.msra.mxu0 0.0
      %718 = vmatprep.mubr.f32.mxu0 0.0
      %719 = vmatmul.mubr.f32.gmra.mxu0 %v643
      %v720 = vpop.f32.mrf.mxu0
      %v721 = vadd.f32 %v625, %v720
      %v722 = vpop.f32.mrf.mxu0
      %723 = vmatprep.mubr.f32.mxu0 0.0
      %724 = vmatmul.mubr.f32.gmra.mxu0 %v646
      %v725 = vpop.f32.mrf.mxu0
      %v726 = vadd.f32 %v630, %v725
      %v727 = vpop.f32.mrf.mxu0
      %728 = vmatprep.mubr.f32.mxu0 0.0
      %729 = vmatmul.mubr.f32.gmra.mxu0 %v649
      %v730 = vpop.f32.mrf.mxu0
      %v731 = vadd.f32 %v635, %v730
      %v732 = vpop.f32.mrf.mxu0
      %733 = vmatprep.mubr.f32.mxu0 0.0
      %734 = vmatmul.mubr.f32.gmra.mxu0 %v652
      %v735 = vpop.f32.mrf.mxu0
      %v736 = vadd.f32 %v640, %v735
      %v737 = vpop.f32.mrf.mxu0
      %738 = vdwg.mxu0
      %v739 = vadd.f32 %v721, %v279
      %v740 = vadd.f32 %v726, %v280
      %v741 = vadd.f32 %v731, %v281
      %v742 = vadd.f32 %v736, %v282
      %v743 = vmax.f32 %v739, 0.0
      %v744 = vmax.f32 %v740, 0.0
      %v745 = vmax.f32 %v741, 0.0
      %v746 = vmax.f32 %v742, 0.0
      %vm747 = vcmask 130048
      %748 = vst.msk [vmem:[%s278] sm:$0xff] %vm747, %v743
      %749 = vst.msk [vmem:[%s278 + $0x8] sm:$0xff] %vm747, %v744
      %750 = vst.msk [vmem:[%s278 + $0x10] sm:$0xff] %vm747, %v745
      %751 = vst.msk [vmem:[%s278 + $0x18] sm:$0xff] %vm747, %v746
      %p752 = scmp.lt.s32.totalorder %s18, 3
      %s753 = scalar_select %p752, %s18, 3
      %s754 = smul.addr %s753, 4
      %s755 = smul.addr %s754, 8
      %s756 = scalar_lea.vmem %s7, %s755
      // Predicated region
      $region49: #{tpu_custom_call.1} parent=47 // pred_check
        %p757 = pneg %p188
      $region50: #{tpu_custom_call.1} parent=47 // pred_check_branch
        %759 = sbr.rel (%p757) target = $region52
      $region51: #{tpu_custom_call.1} parent=47 // pred_region
        _
      $region52: #{tpu_custom_call.1} parent=47 // pred_fallthru
        _
    $region48: #{tpu_custom_call.1} parent=5 // pred_fallthru
      _
    %p760 = scmp.le.s32.totalorder 2, %s13
    // Predicated region
    $region53: #{tpu_custom_call.1} parent=5 // pred_check
      %p761 = pneg %p760
    $region54: #{tpu_custom_call.1} parent=5 // pred_check_branch
      %763 = sbr.rel (%p761) target = $region56
    $region55: #{tpu_custom_call.1} parent=5 // pred_region
      %s764 = ssub.s32 %s13, 2
      // Predicated region
      $region57: #{tpu_custom_call.1} parent=55 // pred_check
        %p765 = pneg %p194
      $region58: #{tpu_custom_call.1} parent=55 // pred_check_branch
        %767 = sbr.rel (%p765) target = $region60
      $region59: #{tpu_custom_call.1} parent=55 // pred_region
        %p768 = scmp.lt.s32.totalorder %s19, 3
        %s769 = scalar_select %p768, %s19, 3
        %s770 = smul.addr %s769, 4
        %s771 = smul.addr %s770, 8
        %s772 = scalar_lea.vmem %s7, %s771
      $region60: #{tpu_custom_call.1} parent=55 // pred_fallthru
        _
    $region56: #{tpu_custom_call.1} parent=5 // pred_fallthru
      _
  $region6: #{tpu_custom_call.1} parent=0 // loop_footer
    %s17 = sadd.s32 1, %s13
  $region7: #{tpu_custom_call.1} parent=0 // loop_footer_branch
    %12 = sbr.rel target = $region3
  $region8: #{tpu_custom_call.1} parent=0 // loop_exit
    _

</llo_original>
